<compile_context>
chip_gen: v7x
topology: tpu7x:2x2x1
jax: 0.10.0
libtpu: 0.0.40
codegen_flags: <defaults>
</compile_context>

<pallas_src>
import math

import jax
import jax.numpy as jnp
import numpy as np
from jax import lax
from jax.experimental import pallas as pl
from jax.experimental.pallas import tpu as pltpu

SELU_ALPHA = 1.6732632423543772848170429916717
SELU_SCALE = 1.0507009873554804934193349852946
EPS = 1e-15
LANES = 128


def _round_up(v, m):
    return (v + m - 1) // m * m


def _selu(v):
    return SELU_SCALE * jnp.where(
        v > 0.0, v, SELU_ALPHA * (jnp.exp(jnp.minimum(v, 0.0)) - 1.0))


def _dmon_batched_kernel(deg_ref, x_ref, adj_ref, w_ref, b_ref,
                         pooled_ref, cadj_ref, loss_ref):
    B, N, F = x_ref.shape
    C = w_ref.shape[1]
    pooled_pad = pooled_ref.shape[1] - B * F
    cadj_pad = cadj_ref.shape[1] - C

    # ---- whole (small) problem resident in VMEM, loaded once ----
    deg = deg_ref[...]          # (N, 1) f32  row sums of the *f32* adjacency
    x = x_ref[...]              # (B, N, F) f32
    adj16 = adj_ref[...]        # (N, N) bf16 (cast in the wrapper)
    w = w_ref[...]              # (F, C) f32
    bias = b_ref[...]           # (1, C) f32

    # ---- constants hoisted once (JAX does not CSE broadcast_in_dim) ----
    row = lax.broadcasted_iota(jnp.int32, (C, C), 0)
    col = lax.broadcasted_iota(jnp.int32, (C, C), 1)
    eye = (row == col).astype(jnp.float32)
    off_diag = 1.0 - eye
    ones_row = jnp.ones((1, C), dtype=jnp.float32)
    inv_i_norm = 1.0 / math.sqrt(C)      # trace-time Python constants
    cl_scale = math.sqrt(C) / N
    inv_b = 1.0 / B

    # total degree 2m = sum(adj), from the exact f32 row-sum vector
    two_m = jnp.sum(deg)
    inv_two_m = 1.0 / two_m

    # ---- cluster assignment for ALL B*N nodes in one bf16 MXU call ----
    x_flat16 = x.reshape(B * N, F).astype(jnp.bfloat16)
    w16 = w.astype(jnp.bfloat16)
    logits = jnp.dot(x_flat16, w16, preferred_element_type=jnp.float32) + bias  # (B*N, C)
    logits = logits - jnp.max(logits, axis=-1, keepdims=True)
    e = jnp.exp(logits)
    # exact reciprocal: the softmax feeds every downstream loss (review note)
    s_all = e / jnp.sum(e, axis=-1, keepdims=True)                              # (B*N, C) f32
    # TODO(synk): training-mode dropout (p=0.3) on the MLP output not implemented.
    s_all16 = s_all.astype(jnp.bfloat16)

    dims00 = (((0,), (0,)), ((), ()))     # contract dim 0 of both operands (== lhs^T @ rhs)

    # ---- single pass of the O(N^2) adjacency through the MXU ----
    # S_stack = [S_1 | S_2 | ... | S_B]  (N, B*C), built with static slices + lane concat
    s_blocks16 = [s_all16[b * N:(b + 1) * N, :] for b in range(B)]
    s_stack16 = jnp.concatenate(s_blocks16, axis=1) if B > 1 else s_blocks16[0]
    m_all = jnp.dot(adj16, s_stack16, preferred_element_type=jnp.float32)       # (N, B*C) f32

    pooled_blocks = []
    cadj_acc = jnp.zeros((C, C), jnp.float32)
    sl_acc = 0.0
    ol_acc = 0.0
    cl_acc = 0.0

    # B is small & static -> unrolled Python loop; heavy lifting stays on the MXU.
    for b in range(B):
        s_b = s_all[b * N:(b + 1) * N, :]      # (N, C) f32
        s_b16 = s_blocks16[b]                  # (N, C) bf16
        x_b16 = x_flat16[b * N:(b + 1) * N, :]
        m_b = m_all[:, b * C:(b + 1) * C]      # (N, C) f32 = A @ S_b

        # --- pooled node features: selu(S^T X) ---
        pooled = lax.dot_general(s_b16, x_b16, dims00,
                                 preferred_element_type=jnp.float32)            # (C, F)
        pooled_blocks.append(_selu(pooled))

        # --- coarse adjacency: S^T (A S) ---
        out_adj = lax.dot_general(s_b16, m_b.astype(jnp.bfloat16), dims00,
                                  preferred_element_type=jnp.float32)           # (C, C)

        # --- spectral (modularity) loss ---
        # ca = S^T deg (exact f32; deg precomputed from the f32 adjacency); DMoN's
        # cb equals ca^T for any adjacency, so only sum(ca^2)/2m is needed.
        ca = jnp.sum(s_b * deg, axis=0, keepdims=True)                          # (1, C) f32
        tr = jnp.sum(out_adj * eye)
        sl_acc += -(tr - jnp.sum(ca * ca) * inv_two_m) * inv_two_m

        # --- orthogonality loss ---
        ss = lax.dot_general(s_b16, s_b16, dims00,
                             preferred_element_type=jnp.float32)                # (C, C)
        inv_fro = lax.rsqrt(jnp.sum(ss * ss))
        diff = ss * inv_fro - eye * inv_i_norm
        ol_acc += jnp.sqrt(jnp.sum(diff * diff))

        # --- cluster loss ---
        cs = jnp.sum(s_b, axis=0, keepdims=True)                                # (1, C)
        cl_acc += jnp.sqrt(jnp.sum(cs * cs)) * cl_scale - 1.0

        # --- zero diagonal + symmetric degree-normalization of the coarse adjacency ---
        oa = out_adj * off_diag
        d_col = jnp.sqrt(jnp.sum(oa, axis=-1, keepdims=True)) + EPS             # (C, 1) row sums
        # same row-sum vector laid out as a (1, C) row (correct for non-symmetric adj too)
        d_row = jnp.sqrt(lax.dot_general(ones_row, oa, (((1,), (1,)), ((), ())),
                                         preferred_element_type=jnp.float32)) + EPS
        cadj_acc += (oa * pl.reciprocal(d_col, approx=True)
                        * pl.reciprocal(d_row, approx=True))

    # ---- lane-dense, unmasked stores of the batch-averaged outputs ----
    if pooled_pad > 0:
        pooled_blocks.append(jnp.zeros((C, pooled_pad), jnp.float32))
    pooled_ref[...] = (jnp.concatenate(pooled_blocks, axis=-1)
                       if len(pooled_blocks) > 1 else pooled_blocks[0])

    cadj_out = cadj_acc * inv_b
    if cadj_pad > 0:
        cadj_out = jnp.concatenate(
            [cadj_out, jnp.zeros((C, cadj_pad), jnp.float32)], axis=-1)
    cadj_ref[...] = cadj_out

    # pack the three scalar losses into one lane-dense (1, 128) row
    lane = lax.broadcasted_iota(jnp.int32, (1, loss_ref.shape[1]), 1)
    loss_ref[...] = jnp.where(lane == 0, sl_acc * inv_b,
                    jnp.where(lane == 1, ol_acc * inv_b,
                    jnp.where(lane == 2, cl_acc * inv_b, 0.0)))


def batched_dmon_pool(x, adj, w, bias):
    x = x.astype(jnp.float32)
    adj = adj.astype(jnp.float32)
    w = w.astype(jnp.float32)
    bias = bias.astype(jnp.float32)

    B, N, F = x.shape
    C = w.shape[1]
    pooled_cols = _round_up(B * F, LANES)
    cadj_cols = _round_up(C, LANES)

    # exact-f32 degree vector computed OUTSIDE the kernel (adj goes in as bf16)
    deg = jnp.sum(adj, axis=-1, keepdims=True)        # (N, 1) f32
    adj16 = adj.astype(jnp.bfloat16)                  # halves adj DMA + VMEM residency

    out_shapes = (
        jax.ShapeDtypeStruct((C, pooled_cols), jnp.float32),  # [selu(S_b^T X_b)]_b, lane-packed
        jax.ShapeDtypeStruct((C, cadj_cols), jnp.float32),    # coarse adj, zero-padded lanes
        jax.ShapeDtypeStruct((1, LANES), jnp.float32),        # [spectral, ortho, cluster, 0...]
    )
    vmem = pl.BlockSpec(memory_space=pltpu.MemorySpace.VMEM)

    # Single invocation (no grid): the whole problem fits comfortably in VMEM at these
    # shapes. For large N, tile adj with a reduction grid axis instead (see TODO above)
    # and size vmem_limit_bytes from the per-step footprint.
    pooled_slab, cadj_slab, losses = pl.pallas_call(
        _dmon_batched_kernel,
        out_shape=out_shapes,
        in_specs=[vmem, vmem, vmem, vmem, vmem],
        out_specs=(vmem, vmem, vmem),
        compiler_params=pltpu.CompilerParams(vmem_limit_bytes=32 * 1024 * 1024),
    )(deg, x, adj16, w, bias)

    # Wrapper-side unpacking (pure XLA layout plumbing):
    # pooled slab columns are [b*F : (b+1)*F] per graph -> (B, 1, C, F) like torch.stack
    pooled = (pooled_slab[:, :B * F]
              .reshape(C, B, F)
              .transpose(1, 0, 2)[:, None, :, :])
    cadj = cadj_slab[:, :C]
    return pooled, cadj, losses[0, 0], losses[0, 1], losses[0, 2]


def _ref_batched_dmon_pool(x, adj, w, bias):
    """Pure-JAX reference (mirrors torch_geometric DMoNPooling in eval mode)."""
    B, N, F = x.shape
    C = w.shape[1]
    eye = jnp.eye(C, dtype=jnp.float32)
    i_norm = jnp.sqrt(jnp.float32(C))

    def one(xb):
        s = jax.nn.softmax(xb @ w + bias, axis=-1)
        out = jax.nn.selu(s.T @ xb)
        out_adj = s.T @ adj @ s
        deg = adj.sum(-1, keepdims=True)
        m = deg.sum() / 2.0
        ca = s.T @ deg
        cb = deg.T @ s
        normalizer = ca @ cb / 2.0 / m
        spectral = -jnp.trace(out_adj - normalizer) / 2.0 / m
        ss = s.T @ s
        ortho = jnp.linalg.norm(ss / jnp.linalg.norm(ss) - eye / i_norm)
        cs = s.sum(0)
        cluster = jnp.linalg.norm(cs) / N * i_norm - 1.0
        oa = out_adj * (1.0 - eye)
        d = jnp.sqrt(oa.sum(-1, keepdims=True)) + EPS
        oa = oa / d / d.T
        return out, oa, spectral, ortho, cluster

    outs, oas, sls, ols, cls = jax.vmap(one)(x)
    return outs[:, None], oas.mean(0), sls.mean(), ols.mean(), cls.mean()


if __name__ == "__main__":
    B, N, F, C = 2, 16, 32, 8  # batch, nodes, features, clusters (k)

    key = jax.random.PRNGKey(0)
    kx, ka, kw, kb = jax.random.split(key, 4)

    x = jax.random.normal(kx, (B, N, F), dtype=jnp.float32)
    a = jax.random.uniform(ka, (N, N), dtype=jnp.float32)
    adj = 0.5 * (a + a.T)                                        # symmetric, nonnegative adjacency
    w = 0.1 * jax.random.normal(kw, (F, C), dtype=jnp.float32)   # deterministic synthetic Linear
    bias = 0.1 * jax.random.normal(kb, (1, C), dtype=jnp.float32)

    pooled, cadj, sl, ol, cl = batched_dmon_pool(x, adj, w, bias)
    jax.block_until_ready((pooled, cadj, sl, ol, cl))

    # sanity-check against a pure-JAX f32 reference (loose tolerance: bf16 MXU operands / bf16 adj)
    r_pooled, r_cadj, r_sl, r_ol, r_cl = _ref_batched_dmon_pool(x, adj, w, bias)
    np.testing.assert_allclose(np.asarray(pooled), np.asarray(r_pooled), rtol=5e-2, atol=5e-2)
    np.testing.assert_allclose(np.asarray(cadj), np.asarray(r_cadj), rtol=5e-2, atol=5e-2)
    np.testing.assert_allclose(float(sl), float(r_sl), rtol=5e-2, atol=5e-2)
    np.testing.assert_allclose(float(ol), float(r_ol), rtol=5e-2, atol=5e-2)
    np.testing.assert_allclose(float(cl), float(r_cl), rtol=5e-2, atol=5e-2)

    assert pooled.shape == (B, 1, C, F) and cadj.shape == (C, C)
    print("KERNEL_OK")
</pallas_src>

<mosaic_0001>
module attributes {stable_mosaic.version = 11 : i64} {
  func.func @_dmon_batched_kernel(%arg0: memref<16x1xf32, #tpu.memory_space<vmem>>, %arg1: memref<2x16x32xf32, #tpu.memory_space<vmem>>, %arg2: memref<16x16xbf16, #tpu.memory_space<vmem>>, %arg3: memref<32x8xf32, #tpu.memory_space<vmem>>, %arg4: memref<1x8xf32, #tpu.memory_space<vmem>>, %arg5: memref<8x128xf32, #tpu.memory_space<vmem>>, %arg6: memref<8x128xf32, #tpu.memory_space<vmem>>, %arg7: memref<1x128xf32, #tpu.memory_space<vmem>>) attributes {dimension_semantics = [], scalar_prefetch = 0 : i64, scratch_operands = 0 : i64, tpu.core_type = #tpu.core_type<tc>} {
    %c0 = arith.constant 0 : index
    %c0_0 = arith.constant 0 : index
    %0 = vector.load %arg0[%c0, %c0_0] : memref<16x1xf32, #tpu.memory_space<vmem>>, vector<16x1xf32>
    %c0_1 = arith.constant 0 : index
    %c0_2 = arith.constant 0 : index
    %c0_3 = arith.constant 0 : index
    %1 = vector.load %arg1[%c0_1, %c0_2, %c0_3] : memref<2x16x32xf32, #tpu.memory_space<vmem>>, vector<2x16x32xf32>
    %c0_4 = arith.constant 0 : index
    %c0_5 = arith.constant 0 : index
    %2 = vector.load %arg2[%c0_4, %c0_5] : memref<16x16xbf16, #tpu.memory_space<vmem>>, vector<16x16xbf16>
    %c0_6 = arith.constant 0 : index
    %c0_7 = arith.constant 0 : index
    %3 = vector.load %arg3[%c0_6, %c0_7] : memref<32x8xf32, #tpu.memory_space<vmem>>, vector<32x8xf32>
    %c0_8 = arith.constant 0 : index
    %c0_9 = arith.constant 0 : index
    %4 = vector.load %arg4[%c0_8, %c0_9] : memref<1x8xf32, #tpu.memory_space<vmem>>, vector<1x8xf32>
    %5 = tpu.iota {dimensions = array<i32: 0>} : vector<8x8xi32>
    %6 = tpu.iota {dimensions = array<i32: 1>} : vector<8x8xi32>
    %7 = arith.cmpi eq, %5, %6 : vector<8x8xi32>
    %8 = arith.extui %7 : vector<8x8xi1> to vector<8x8xi32>
    %9 = arith.sitofp %8 : vector<8x8xi32> to vector<8x8xf32>
    %cst = arith.constant 1.000000e+00 : f32
    %10 = vector.broadcast %cst : f32 to vector<8x8xf32>
    %11 = arith.subf %10, %9 : vector<8x8xf32>
    %cst_10 = arith.constant 1.000000e+00 : f32
    %12 = vector.broadcast %cst_10 : f32 to vector<1x8xf32>
    %13 = vector.shape_cast %0 : vector<16x1xf32> to vector<1x16x1xf32>
    %cst_11 = arith.constant dense<0.000000e+00> : vector<1xf32>
    %14 = vector.multi_reduction <add>, %13, %cst_11 [1, 2] : vector<1x16x1xf32> to vector<1xf32>
    %15 = vector.shape_cast %14 : vector<1xf32> to vector<1x1x1xf32>
    %16 = vector.extract %15[0, 0, 0] : f32 from vector<1x1x1xf32>
    %cst_12 = arith.constant 1.000000e+00 : f32
    %17 = arith.divf %cst_12, %16 : f32
    %18 = vector.shape_cast %1 : vector<2x16x32xf32> to vector<32x32xf32>
    %19 = arith.truncf %18 : vector<32x32xf32> to vector<32x32xbf16>
    %20 = arith.truncf %3 : vector<32x8xf32> to vector<32x8xbf16>
    %cst_13 = arith.constant dense<0.000000e+00> : vector<32x8xf32>
    %21 = tpu.matmul %19, %20, %cst_13 {dimension_numbers = #tpu.dot_dimension_numbers<[1], [0], [0], [1], [0, 0, 1, 1], [], []>} : vector<32x32xbf16>, vector<32x8xbf16>, vector<32x8xf32> -> vector<32x8xf32>
    %22 = vector.broadcast %4 : vector<1x8xf32> to vector<32x8xf32>
    %23 = arith.addf %21, %22 : vector<32x8xf32>
    %cst_14 = arith.constant dense<0xFF800000> : vector<32xf32>
    %24 = vector.multi_reduction <maximumf>, %23, %cst_14 [1] : vector<32x8xf32> to vector<32xf32>
    %25 = vector.shape_cast %24 : vector<32xf32> to vector<32x1xf32>
    %26 = vector.broadcast %25 : vector<32x1xf32> to vector<32x8xf32>
    %27 = arith.subf %23, %26 : vector<32x8xf32>
    %28 = math.exp %27 : vector<32x8xf32>
    %cst_15 = arith.constant dense<0.000000e+00> : vector<32xf32>
    %29 = vector.multi_reduction <add>, %28, %cst_15 [1] : vector<32x8xf32> to vector<32xf32>
    %30 = vector.shape_cast %29 : vector<32xf32> to vector<32x1xf32>
    %31 = vector.broadcast %30 : vector<32x1xf32> to vector<32x8xf32>
    %32 = arith.divf %28, %31 : vector<32x8xf32>
    %33 = arith.truncf %32 : vector<32x8xf32> to vector<32x8xbf16>
    %34 = vector.extract_strided_slice %33 {offsets = [0, 0], sizes = [16, 8], strides = [1, 1]} : vector<32x8xbf16> to vector<16x8xbf16>
    %35 = vector.extract_strided_slice %33 {offsets = [16, 0], sizes = [16, 8], strides = [1, 1]} : vector<32x8xbf16> to vector<16x8xbf16>
    %36 = tpu.concatenate %34, %35 in 1 : vector<16x8xbf16>, vector<16x8xbf16> -> vector<16x16xbf16>
    %cst_16 = arith.constant dense<0.000000e+00> : vector<16x16xf32>
    %37 = tpu.matmul %2, %36, %cst_16 {dimension_numbers = #tpu.dot_dimension_numbers<[1], [0], [0], [1], [0, 0, 1, 1], [], []>} : vector<16x16xbf16>, vector<16x16xbf16>, vector<16x16xf32> -> vector<16x16xf32>
    %cst_17 = arith.constant 0.000000e+00 : f32
    %38 = vector.broadcast %cst_17 : f32 to vector<8x8xf32>
    %39 = vector.extract_strided_slice %32 {offsets = [0, 0], sizes = [16, 8], strides = [1, 1]} : vector<32x8xf32> to vector<16x8xf32>
    %40 = vector.extract_strided_slice %19 {offsets = [0, 0], sizes = [16, 32], strides = [1, 1]} : vector<32x32xbf16> to vector<16x32xbf16>
    %41 = vector.extract_strided_slice %37 {offsets = [0, 0], sizes = [16, 8], strides = [1, 1]} : vector<16x16xf32> to vector<16x8xf32>
    %cst_18 = arith.constant dense<0.000000e+00> : vector<8x32xf32>
    %42 = tpu.matmul %34, %40, %cst_18 {dimension_numbers = #tpu.dot_dimension_numbers<[0], [0], [1], [1], [0, 1, 1, 1], [], []>} : vector<16x8xbf16>, vector<16x32xbf16>, vector<8x32xf32> -> vector<8x32xf32>
    %cst_19 = arith.constant 0.000000e+00 : f32
    %43 = vector.broadcast %cst_19 : f32 to vector<8x32xf32>
    %44 = arith.cmpf ogt, %42, %43 : vector<8x32xf32>
    %cst_20 = arith.constant 0.000000e+00 : f32
    %45 = vector.broadcast %cst_20 : f32 to vector<8x32xf32>
    %46 = arith.minimumf %42, %45 : vector<8x32xf32>
    %47 = math.exp %46 : vector<8x32xf32>
    %cst_21 = arith.constant 1.000000e+00 : f32
    %48 = vector.broadcast %cst_21 : f32 to vector<8x32xf32>
    %49 = arith.subf %47, %48 : vector<8x32xf32>
    %cst_22 = arith.constant 1.67326319 : f32
    %50 = vector.broadcast %cst_22 : f32 to vector<8x32xf32>
    %51 = arith.mulf %50, %49 : vector<8x32xf32>
    %52 = arith.select %44, %42, %51 : vector<8x32xi1>, vector<8x32xf32>
    %cst_23 = arith.constant 1.05070102 : f32
    %53 = vector.broadcast %cst_23 : f32 to vector<8x32xf32>
    %54 = arith.mulf %53, %52 : vector<8x32xf32>
    %55 = arith.truncf %41 : vector<16x8xf32> to vector<16x8xbf16>
    %cst_24 = arith.constant dense<0.000000e+00> : vector<8x8xf32>
    %56 = tpu.matmul %34, %55, %cst_24 {dimension_numbers = #tpu.dot_dimension_numbers<[0], [0], [1], [1], [0, 1, 1, 1], [], []>} : vector<16x8xbf16>, vector<16x8xbf16>, vector<8x8xf32> -> vector<8x8xf32>
    %57 = vector.broadcast %0 : vector<16x1xf32> to vector<16x8xf32>
    %58 = arith.mulf %39, %57 : vector<16x8xf32>
    %cst_25 = arith.constant dense<0.000000e+00> : vector<8xf32>
    %59 = vector.multi_reduction <add>, %58, %cst_25 [0] : vector<16x8xf32> to vector<8xf32>
    %60 = vector.shape_cast %59 : vector<8xf32> to vector<1x8xf32>
    %61 = arith.mulf %56, %9 : vector<8x8xf32>
    %62 = vector.shape_cast %61 : vector<8x8xf32> to vector<1x8x8xf32>
    %cst_26 = arith.constant dense<0.000000e+00> : vector<1xf32>
    %63 = vector.multi_reduction <add>, %62, %cst_26 [1, 2] : vector<1x8x8xf32> to vector<1xf32>
    %64 = vector.shape_cast %63 : vector<1xf32> to vector<1x1x1xf32>
    %65 = vector.extract %64[0, 0, 0] : f32 from vector<1x1x1xf32>
    %66 = arith.mulf %60, %60 : vector<1x8xf32>
    %67 = vector.shape_cast %66 : vector<1x8xf32> to vector<1x1x8xf32>
    %cst_27 = arith.constant dense<0.000000e+00> : vector<1xf32>
    %68 = vector.multi_reduction <add>, %67, %cst_27 [1, 2] : vector<1x1x8xf32> to vector<1xf32>
    %69 = vector.shape_cast %68 : vector<1xf32> to vector<1x1x1xf32>
    %70 = vector.extract %69[0, 0, 0] : f32 from vector<1x1x1xf32>
    %71 = arith.mulf %70, %17 : f32
    %72 = arith.subf %65, %71 : f32
    %cst_28 = arith.constant 0.000000e+00 : f32
    %73 = arith.subf %cst_28, %72 : f32
    %74 = arith.mulf %73, %17 : f32
    %cst_29 = arith.constant 0.000000e+00 : f32
    %75 = arith.addf %cst_29, %74 : f32
    %cst_30 = arith.constant dense<0.000000e+00> : vector<8x8xf32>
    %76 = tpu.matmul %34, %34, %cst_30 {dimension_numbers = #tpu.dot_dimension_numbers<[0], [0], [1], [1], [0, 1, 1, 1], [], []>} : vector<16x8xbf16>, vector<16x8xbf16>, vector<8x8xf32> -> vector<8x8xf32>
    %77 = arith.mulf %76, %76 : vector<8x8xf32>
    %78 = vector.shape_cast %77 : vector<8x8xf32> to vector<1x8x8xf32>
    %cst_31 = arith.constant dense<0.000000e+00> : vector<1xf32>
    %79 = vector.multi_reduction <add>, %78, %cst_31 [1, 2] : vector<1x8x8xf32> to vector<1xf32>
    %80 = vector.shape_cast %79 : vector<1xf32> to vector<1x1x1xf32>
    %81 = vector.extract %80[0, 0, 0] : f32 from vector<1x1x1xf32>
    %82 = math.rsqrt %81 : f32
    %83 = vector.broadcast %82 : f32 to vector<8x8xf32>
    %84 = arith.mulf %76, %83 : vector<8x8xf32>
    %cst_32 = arith.constant 0.353553385 : f32
    %85 = vector.broadcast %cst_32 : f32 to vector<8x8xf32>
    %86 = arith.mulf %9, %85 : vector<8x8xf32>
    %87 = arith.subf %84, %86 : vector<8x8xf32>
    %88 = arith.mulf %87, %87 : vector<8x8xf32>
    %89 = vector.shape_cast %88 : vector<8x8xf32> to vector<1x8x8xf32>
    %cst_33 = arith.constant dense<0.000000e+00> : vector<1xf32>
    %90 = vector.multi_reduction <add>, %89, %cst_33 [1, 2] : vector<1x8x8xf32> to vector<1xf32>
    %91 = vector.shape_cast %90 : vector<1xf32> to vector<1x1x1xf32>
    %92 = vector.extract %91[0, 0, 0] : f32 from vector<1x1x1xf32>
    %93 = math.sqrt %92 : f32
    %cst_34 = arith.constant 0.000000e+00 : f32
    %94 = arith.addf %cst_34, %93 : f32
    %cst_35 = arith.constant dense<0.000000e+00> : vector<8xf32>
    %95 = vector.multi_reduction <add>, %39, %cst_35 [0] : vector<16x8xf32> to vector<8xf32>
    %96 = vector.shape_cast %95 : vector<8xf32> to vector<1x8xf32>
    %97 = arith.mulf %96, %96 : vector<1x8xf32>
    %98 = vector.shape_cast %97 : vector<1x8xf32> to vector<1x1x8xf32>
    %cst_36 = arith.constant dense<0.000000e+00> : vector<1xf32>
    %99 = vector.multi_reduction <add>, %98, %cst_36 [1, 2] : vector<1x1x8xf32> to vector<1xf32>
    %100 = vector.shape_cast %99 : vector<1xf32> to vector<1x1x1xf32>
    %101 = vector.extract %100[0, 0, 0] : f32 from vector<1x1x1xf32>
    %102 = math.sqrt %101 : f32
    %cst_37 = arith.constant 0.176776692 : f32
    %103 = arith.mulf %102, %cst_37 : f32
    %cst_38 = arith.constant 1.000000e+00 : f32
    %104 = arith.subf %103, %cst_38 : f32
    %cst_39 = arith.constant 0.000000e+00 : f32
    %105 = arith.addf %cst_39, %104 : f32
    %106 = arith.mulf %56, %11 : vector<8x8xf32>
    %cst_40 = arith.constant dense<0.000000e+00> : vector<8xf32>
    %107 = vector.multi_reduction <add>, %106, %cst_40 [1] : vector<8x8xf32> to vector<8xf32>
    %108 = vector.shape_cast %107 : vector<8xf32> to vector<8x1xf32>
    %109 = math.sqrt %108 : vector<8x1xf32>
    %cst_41 = arith.constant 1.000000e-15 : f32
    %110 = vector.broadcast %cst_41 : f32 to vector<8x1xf32>
    %111 = arith.addf %109, %110 : vector<8x1xf32>
    %cst_42 = arith.constant dense<0.000000e+00> : vector<1x8xf32>
    %112 = tpu.matmul %12, %106, %cst_42 {dimension_numbers = #tpu.dot_dimension_numbers<[1], [1], [0], [0], [0, 0, 1, 0], [], []>} : vector<1x8xf32>, vector<8x8xf32>, vector<1x8xf32> -> vector<1x8xf32>
    %113 = math.sqrt %112 : vector<1x8xf32>
    %cst_43 = arith.constant 1.000000e-15 : f32
    %114 = vector.broadcast %cst_43 : f32 to vector<1x8xf32>
    %115 = arith.addf %113, %114 : vector<1x8xf32>
    %116 = tpu.reciprocal %111 {approx = true} : vector<8x1xf32> -> vector<8x1xf32>
    %117 = vector.broadcast %116 : vector<8x1xf32> to vector<8x8xf32>
    %118 = arith.mulf %106, %117 : vector<8x8xf32>
    %119 = tpu.reciprocal %115 {approx = true} : vector<1x8xf32> -> vector<1x8xf32>
    %120 = vector.broadcast %119 : vector<1x8xf32> to vector<8x8xf32>
    %121 = arith.mulf %118, %120 : vector<8x8xf32>
    %122 = arith.addf %38, %121 : vector<8x8xf32>
    %123 = vector.extract_strided_slice %32 {offsets = [16, 0], sizes = [16, 8], strides = [1, 1]} : vector<32x8xf32> to vector<16x8xf32>
    %124 = vector.extract_strided_slice %19 {offsets = [16, 0], sizes = [16, 32], strides = [1, 1]} : vector<32x32xbf16> to vector<16x32xbf16>
    %125 = vector.extract_strided_slice %37 {offsets = [0, 8], sizes = [16, 8], strides = [1, 1]} : vector<16x16xf32> to vector<16x8xf32>
    %cst_44 = arith.constant dense<0.000000e+00> : vector<8x32xf32>
    %126 = tpu.matmul %35, %124, %cst_44 {dimension_numbers = #tpu.dot_dimension_numbers<[0], [0], [1], [1], [0, 1, 1, 1], [], []>} : vector<16x8xbf16>, vector<16x32xbf16>, vector<8x32xf32> -> vector<8x32xf32>
    %cst_45 = arith.constant 0.000000e+00 : f32
    %127 = vector.broadcast %cst_45 : f32 to vector<8x32xf32>
    %128 = arith.cmpf ogt, %126, %127 : vector<8x32xf32>
    %cst_46 = arith.constant 0.000000e+00 : f32
    %129 = vector.broadcast %cst_46 : f32 to vector<8x32xf32>
    %130 = arith.minimumf %126, %129 : vector<8x32xf32>
    %131 = math.exp %130 : vector<8x32xf32>
    %cst_47 = arith.constant 1.000000e+00 : f32
    %132 = vector.broadcast %cst_47 : f32 to vector<8x32xf32>
    %133 = arith.subf %131, %132 : vector<8x32xf32>
    %cst_48 = arith.constant 1.67326319 : f32
    %134 = vector.broadcast %cst_48 : f32 to vector<8x32xf32>
    %135 = arith.mulf %134, %133 : vector<8x32xf32>
    %136 = arith.select %128, %126, %135 : vector<8x32xi1>, vector<8x32xf32>
    %cst_49 = arith.constant 1.05070102 : f32
    %137 = vector.broadcast %cst_49 : f32 to vector<8x32xf32>
    %138 = arith.mulf %137, %136 : vector<8x32xf32>
    %139 = arith.truncf %125 : vector<16x8xf32> to vector<16x8xbf16>
    %cst_50 = arith.constant dense<0.000000e+00> : vector<8x8xf32>
    %140 = tpu.matmul %35, %139, %cst_50 {dimension_numbers = #tpu.dot_dimension_numbers<[0], [0], [1], [1], [0, 1, 1, 1], [], []>} : vector<16x8xbf16>, vector<16x8xbf16>, vector<8x8xf32> -> vector<8x8xf32>
    %141 = vector.broadcast %0 : vector<16x1xf32> to vector<16x8xf32>
    %142 = arith.mulf %123, %141 : vector<16x8xf32>
    %cst_51 = arith.constant dense<0.000000e+00> : vector<8xf32>
    %143 = vector.multi_reduction <add>, %142, %cst_51 [0] : vector<16x8xf32> to vector<8xf32>
    %144 = vector.shape_cast %143 : vector<8xf32> to vector<1x8xf32>
    %145 = arith.mulf %140, %9 : vector<8x8xf32>
    %146 = vector.shape_cast %145 : vector<8x8xf32> to vector<1x8x8xf32>
    %cst_52 = arith.constant dense<0.000000e+00> : vector<1xf32>
    %147 = vector.multi_reduction <add>, %146, %cst_52 [1, 2] : vector<1x8x8xf32> to vector<1xf32>
    %148 = vector.shape_cast %147 : vector<1xf32> to vector<1x1x1xf32>
    %149 = vector.extract %148[0, 0, 0] : f32 from vector<1x1x1xf32>
    %150 = arith.mulf %144, %144 : vector<1x8xf32>
    %151 = vector.shape_cast %150 : vector<1x8xf32> to vector<1x1x8xf32>
    %cst_53 = arith.constant dense<0.000000e+00> : vector<1xf32>
    %152 = vector.multi_reduction <add>, %151, %cst_53 [1, 2] : vector<1x1x8xf32> to vector<1xf32>
    %153 = vector.shape_cast %152 : vector<1xf32> to vector<1x1x1xf32>
    %154 = vector.extract %153[0, 0, 0] : f32 from vector<1x1x1xf32>
    %155 = arith.mulf %154, %17 : f32
    %156 = arith.subf %149, %155 : f32
    %cst_54 = arith.constant 0.000000e+00 : f32
    %157 = arith.subf %cst_54, %156 : f32
    %158 = arith.mulf %157, %17 : f32
    %159 = arith.addf %75, %158 : f32
    %cst_55 = arith.constant dense<0.000000e+00> : vector<8x8xf32>
    %160 = tpu.matmul %35, %35, %cst_55 {dimension_numbers = #tpu.dot_dimension_numbers<[0], [0], [1], [1], [0, 1, 1, 1], [], []>} : vector<16x8xbf16>, vector<16x8xbf16>, vector<8x8xf32> -> vector<8x8xf32>
    %161 = arith.mulf %160, %160 : vector<8x8xf32>
    %162 = vector.shape_cast %161 : vector<8x8xf32> to vector<1x8x8xf32>
    %cst_56 = arith.constant dense<0.000000e+00> : vector<1xf32>
    %163 = vector.multi_reduction <add>, %162, %cst_56 [1, 2] : vector<1x8x8xf32> to vector<1xf32>
    %164 = vector.shape_cast %163 : vector<1xf32> to vector<1x1x1xf32>
    %165 = vector.extract %164[0, 0, 0] : f32 from vector<1x1x1xf32>
    %166 = math.rsqrt %165 : f32
    %167 = vector.broadcast %166 : f32 to vector<8x8xf32>
    %168 = arith.mulf %160, %167 : vector<8x8xf32>
    %cst_57 = arith.constant 0.353553385 : f32
    %169 = vector.broadcast %cst_57 : f32 to vector<8x8xf32>
    %170 = arith.mulf %9, %169 : vector<8x8xf32>
    %171 = arith.subf %168, %170 : vector<8x8xf32>
    %172 = arith.mulf %171, %171 : vector<8x8xf32>
    %173 = vector.shape_cast %172 : vector<8x8xf32> to vector<1x8x8xf32>
    %cst_58 = arith.constant dense<0.000000e+00> : vector<1xf32>
    %174 = vector.multi_reduction <add>, %173, %cst_58 [1, 2] : vector<1x8x8xf32> to vector<1xf32>
    %175 = vector.shape_cast %174 : vector<1xf32> to vector<1x1x1xf32>
    %176 = vector.extract %175[0, 0, 0] : f32 from vector<1x1x1xf32>
    %177 = math.sqrt %176 : f32
    %178 = arith.addf %94, %177 : f32
    %cst_59 = arith.constant dense<0.000000e+00> : vector<8xf32>
    %179 = vector.multi_reduction <add>, %123, %cst_59 [0] : vector<16x8xf32> to vector<8xf32>
    %180 = vector.shape_cast %179 : vector<8xf32> to vector<1x8xf32>
    %181 = arith.mulf %180, %180 : vector<1x8xf32>
    %182 = vector.shape_cast %181 : vector<1x8xf32> to vector<1x1x8xf32>
    %cst_60 = arith.constant dense<0.000000e+00> : vector<1xf32>
    %183 = vector.multi_reduction <add>, %182, %cst_60 [1, 2] : vector<1x1x8xf32> to vector<1xf32>
    %184 = vector.shape_cast %183 : vector<1xf32> to vector<1x1x1xf32>
    %185 = vector.extract %184[0, 0, 0] : f32 from vector<1x1x1xf32>
    %186 = math.sqrt %185 : f32
    %cst_61 = arith.constant 0.176776692 : f32
    %187 = arith.mulf %186, %cst_61 : f32
    %cst_62 = arith.constant 1.000000e+00 : f32
    %188 = arith.subf %187, %cst_62 : f32
    %189 = arith.addf %105, %188 : f32
    %190 = arith.mulf %140, %11 : vector<8x8xf32>
    %cst_63 = arith.constant dense<0.000000e+00> : vector<8xf32>
    %191 = vector.multi_reduction <add>, %190, %cst_63 [1] : vector<8x8xf32> to vector<8xf32>
    %192 = vector.shape_cast %191 : vector<8xf32> to vector<8x1xf32>
    %193 = math.sqrt %192 : vector<8x1xf32>
    %cst_64 = arith.constant 1.000000e-15 : f32
    %194 = vector.broadcast %cst_64 : f32 to vector<8x1xf32>
    %195 = arith.addf %193, %194 : vector<8x1xf32>
    %cst_65 = arith.constant dense<0.000000e+00> : vector<1x8xf32>
    %196 = tpu.matmul %12, %190, %cst_65 {dimension_numbers = #tpu.dot_dimension_numbers<[1], [1], [0], [0], [0, 0, 1, 0], [], []>} : vector<1x8xf32>, vector<8x8xf32>, vector<1x8xf32> -> vector<1x8xf32>
    %197 = math.sqrt %196 : vector<1x8xf32>
    %cst_66 = arith.constant 1.000000e-15 : f32
    %198 = vector.broadcast %cst_66 : f32 to vector<1x8xf32>
    %199 = arith.addf %197, %198 : vector<1x8xf32>
    %200 = tpu.reciprocal %195 {approx = true} : vector<8x1xf32> -> vector<8x1xf32>
    %201 = vector.broadcast %200 : vector<8x1xf32> to vector<8x8xf32>
    %202 = arith.mulf %190, %201 : vector<8x8xf32>
    %203 = tpu.reciprocal %199 {approx = true} : vector<1x8xf32> -> vector<1x8xf32>
    %204 = vector.broadcast %203 : vector<1x8xf32> to vector<8x8xf32>
    %205 = arith.mulf %202, %204 : vector<8x8xf32>
    %206 = arith.addf %122, %205 : vector<8x8xf32>
    %cst_67 = arith.constant 0.000000e+00 : f32
    %207 = vector.broadcast %cst_67 : f32 to vector<8x64xf32>
    %208 = tpu.concatenate %54, %138, %207 in 1 : vector<8x32xf32>, vector<8x32xf32>, vector<8x64xf32> -> vector<8x128xf32>
    %c0_68 = arith.constant 0 : index
    %c0_69 = arith.constant 0 : index
    %209 = vector.load %arg5[%c0_68, %c0_69] : memref<8x128xf32, #tpu.memory_space<vmem>>, vector<8x128xf32>
    tpu.vector_store %arg5[%c0_68, %c0_69], %208 {strides = array<i32>} : memref<8x128xf32, #tpu.memory_space<vmem>>, vector<8x128xf32>,
    %cst_70 = arith.constant 5.000000e-01 : f32
    %210 = vector.broadcast %cst_70 : f32 to vector<8x8xf32>
    %211 = arith.mulf %206, %210 : vector<8x8xf32>
    %cst_71 = arith.constant 0.000000e+00 : f32
    %212 = vector.broadcast %cst_71 : f32 to vector<8x120xf32>
    %213 = tpu.concatenate %211, %212 in 1 : vector<8x8xf32>, vector<8x120xf32> -> vector<8x128xf32>
    %c0_72 = arith.constant 0 : index
    %c0_73 = arith.constant 0 : index
    %214 = vector.load %arg6[%c0_72, %c0_73] : memref<8x128xf32, #tpu.memory_space<vmem>>, vector<8x128xf32>
    tpu.vector_store %arg6[%c0_72, %c0_73], %213 {strides = array<i32>} : memref<8x128xf32, #tpu.memory_space<vmem>>, vector<8x128xf32>,
    %215 = tpu.iota {dimensions = array<i32: 1>} : vector<1x128xi32>
    %c0_i32 = arith.constant 0 : i32
    %216 = vector.broadcast %c0_i32 : i32 to vector<1x128xi32>
    %217 = arith.cmpi eq, %215, %216 : vector<1x128xi32>
    %cst_74 = arith.constant 5.000000e-01 : f32
    %218 = arith.mulf %159, %cst_74 : f32
    %c1_i32 = arith.constant 1 : i32
    %219 = vector.broadcast %c1_i32 : i32 to vector<1x128xi32>
    %220 = arith.cmpi eq, %215, %219 : vector<1x128xi32>
    %cst_75 = arith.constant 5.000000e-01 : f32
    %221 = arith.mulf %178, %cst_75 : f32
    %c2_i32 = arith.constant 2 : i32
    %222 = vector.broadcast %c2_i32 : i32 to vector<1x128xi32>
    %223 = arith.cmpi eq, %215, %222 : vector<1x128xi32>
    %cst_76 = arith.constant 5.000000e-01 : f32
    %224 = arith.mulf %189, %cst_76 : f32
    %cst_77 = arith.constant 0.000000e+00 : f32
    %225 = vector.broadcast %224 : f32 to vector<1x128xf32>
    %226 = vector.broadcast %cst_77 : f32 to vector<1x128xf32>
    %227 = arith.select %223, %225, %226 : vector<1x128xi1>, vector<1x128xf32>
    %228 = vector.broadcast %221 : f32 to vector<1x128xf32>
    %229 = arith.select %220, %228, %227 : vector<1x128xi1>, vector<1x128xf32>
    %230 = vector.broadcast %218 : f32 to vector<1x128xf32>
    %231 = arith.select %217, %230, %229 : vector<1x128xi1>, vector<1x128xf32>
    %c0_78 = arith.constant 0 : index
    %c0_79 = arith.constant 0 : index
    %232 = vector.load %arg7[%c0_78, %c0_79] : memref<1x128xf32, #tpu.memory_space<vmem>>, vector<1x128xf32>
    tpu.vector_store %arg7[%c0_78, %c0_79], %231 {strides = array<i32>} : memref<1x128xf32, #tpu.memory_space<vmem>>, vector<1x128xf32>,
    return
  }
}

</mosaic_0001>

<llo_original>
// kernel: tpu_custom_call.1
$region0: #{tpu_custom_call.1}
  #allocation0 [shape = 'u32[]', space=smem, size = 0x4, offset = 0x4, fixed_abs, tag = 'smem constant byte address 0x4 - core index']
  #allocation1 [shape = 'u32[144,128]{1,0:T(1,128)}', space=vmem, size = 0x12000, scoped, tag = 'internal scratch']
  %s0 = inlined_call_operand.vmem [shape: f32[16,1], index: 0, kind: input, shape index: {}]
  %s1 = inlined_call_operand.vmem [shape: f32[2,16,32], index: 1, kind: input, shape index: {}]
  %s2 = inlined_call_operand.vmem [shape: bf16[16,16], index: 2, kind: input, shape index: {}]
  %s3 = inlined_call_operand.vmem [shape: f32[32,8], index: 3, kind: input, shape index: {}]
  %s4 = inlined_call_operand.vmem [shape: f32[1,8], index: 4, kind: input, shape index: {}]
  %s5 = inlined_call_operand.hbm [shape: f32[8,128], index: 5, kind: output, shape index: {0}]
  %s6 = inlined_call_operand.hbm [shape: f32[8,128], index: 6, kind: output, shape index: {1}]
  %s7 = inlined_call_operand.hbm [shape: f32[1,128], index: 7, kind: output, shape index: {2}]
  %8 = xla_tuple %s5, %s6, %s7
  %s9 = sld [smem:[#allocation0]]
  $region46: #{tpu_custom_call.1} parent=0
    _
  %s11 = ssub.s32 1, %s9
  %s12 = scalar_select 0, %s11, %s9
  $region1: #{tpu_custom_call.1} parent=0
    #allocation2 [shape = 'u8[4096]{0}', space=vmem, size = 0x1000, scoped, tag = 'output window, operand 0, single buffered']
    #allocation3 [shape = 's32[1]{0}', space=sflag, size = 0x4, scoped, tag = 'scoped memory for tpu_custom_call.1']
    #allocation4 [shape = 'u8[4096]{0}', space=vmem, size = 0x1000, scoped, tag = 'output window, operand 1, single buffered']
    #allocation5 [shape = 's32[1]{0}', space=sflag, size = 0x4, scoped, tag = 'scoped memory for tpu_custom_call.1']
    #allocation6 [shape = 'u8[512]{0}', space=vmem, size = 0x400, scoped, tag = 'output window, operand 2, single buffered']
    %13 = vsyncpa [#allocation3], 0
    %14 = vsyncpa [#allocation5], 0
    // Predicated region
    $region2: #{tpu_custom_call.1} parent=1 // pred_check
      _
    $region3: #{tpu_custom_call.1} parent=1 // pred_check_branch
      %16 = sbr.rel (0) target = $region5
    $region4: #{tpu_custom_call.1} parent=1 // pred_region
      _
    $region5: #{tpu_custom_call.1} parent=1 // pred_fallthru
      _
    // Predicated region
    $region6: #{tpu_custom_call.1} parent=1 // pred_check
      _
    $region7: #{tpu_custom_call.1} parent=1 // pred_check_branch
      %18 = sbr.rel (0) target = $region9
    $region8: #{tpu_custom_call.1} parent=1 // pred_region
      _
    $region9: #{tpu_custom_call.1} parent=1 // pred_fallthru
      _
    // Predicated region
    $region10: #{tpu_custom_call.1} parent=1 // pred_check
      _
    $region11: #{tpu_custom_call.1} parent=1 // pred_check_branch
      %20 = sbr.rel (0) target = $region13
    $region12: #{tpu_custom_call.1} parent=1 // pred_region
      _
    $region13: #{tpu_custom_call.1} parent=1 // pred_fallthru
      _
    // Predicated region
    $region14: #{tpu_custom_call.1} parent=1 // pred_check
      _
    $region15: #{tpu_custom_call.1} parent=1 // pred_check_branch
      %22 = sbr.rel (0) target = $region17
    $region16: #{tpu_custom_call.1} parent=1 // pred_region
      _
    $region17: #{tpu_custom_call.1} parent=1 // pred_fallthru
      _
    // Predicated region
    $region18: #{tpu_custom_call.1} parent=1 // pred_check
      _
    $region19: #{tpu_custom_call.1} parent=1 // pred_check_branch
      %24 = sbr.rel (0) target = $region21
    $region20: #{tpu_custom_call.1} parent=1 // pred_region
      _
    $region21: #{tpu_custom_call.1} parent=1 // pred_fallthru
      _
    %v26 = vld [vmem:[%s0] sm:$0xff]
    %v27 = vld [vmem:[%s0 + $0x8] sm:$0xff]
    %v28 = vld [vmem:[%s1] sm:$0xff]
    %v29 = vld [vmem:[%s1 + $0x8] sm:$0xff]
    %v30 = vld [vmem:[%s1 + $0x10] sm:$0xff]
    %v31 = vld [vmem:[%s1 + $0x18] sm:$0xff]
    %v32 = vld [vmem:[%s2] sm:$0xf]
    %v33 = vld [vmem:[%s2 + $0x4] sm:$0xf]
    %v34 = vld [vmem:[%s3] sm:$0xff]
    %v35 = vld [vmem:[%s3 + $0x8] sm:$0xff]
    %v36 = vld [vmem:[%s3 + $0x10] sm:$0xff]
    %v37 = vld [vmem:[%s3 + $0x18] sm:$0xff]
    %v38 = vld [vmem:[%s4] sm:$0x1]
    %v39 = vlaneseq
    %v40 = vshrl.u32 %v39, 7
    %v41 = vlaneseq
    %v42 = vand.u32 %v41, 127
    %vm43 = vcmp.eq.s32.totalorder %v40, %v42
    %v44 = vsel %vm43, 1, 0
    %v45 = vcvt.s32.f32 %v44
    %v46 = vsub.f32 1.0, %v45
    %vm47 = vcmask 7168
    %v48 = vsel %vm47, %v26, 0.0
    %v49 = vsel %vm47, %v27, 0.0
    %v50 = vadd.f32 %v48, %v49
    %51 = vadd.xlane.f32.xlu0 %v50
    %v52 = vpop.xlane.xlu0 %51
    %v53 = vrot.slane %v52, 4
    %v54 = vadd.f32 %v52, %v53
    %v55 = vrot.slane %v54, 2
    %v56 = vadd.f32 %v54, %v55
    %v57 = vrot.slane %v56, 1
    %v58 = vadd.f32 %v56, %v57
    %s59 = vtos %v58
    %v60 = vstv %s59
    %v61 = vrcp.pop %v60
    %s62 = vtos %v61
    %v63 = vpack.c.bf16 %v29, %v28
    %v64 = vpack.c.bf16 %v31, %v30
    %v65 = vpack.c.bf16 %v35, %v34
    %v66 = vpack.c.bf16 %v37, %v36
    %v68 = vlaneseq
    %v69 = vshrl.u32 %v68, 7
    %v70 = vsub.s32 0, %v69
    %v71 = vrot.slane %v38, %v70
    %vm73 = vcmask 261120
    %v75 = vsel %vm73, %v63, 0
    %v78 = vsel %vm73, %v64, 0
    %80 = vmatprep.subr.bf16.mxu0 0
    %81 = vmatpush1.bf16.msra.mxu0 %v65
    %82 = vmatprep.subr.bf16.mxu0 0
    %83 = vmatpush1.bf16.msra.mxu0 %v66
    %84 = vmatprep.subr.bf16.mxu0 0
    %85 = vmatpush1.bf16.msra.mxu0 0
    %86 = vmatprep.subr.bf16.mxu0 0
    %87 = vmatpush1.bf16.msra.mxu0 0
    %88 = vmatprep.subr.bf16.mxu0 0
    %89 = vmatpush1.bf16.msra.mxu0 0
    %90 = vmatprep.subr.bf16.mxu0 0
    %91 = vmatpush1.bf16.msra.mxu0 0
    %92 = vmatprep.subr.bf16.mxu0 0
    %93 = vmatpush1.bf16.msra.mxu0 0
    %94 = vmatprep.subr.bf16.mxu0 0
    %95 = vmatpush1.bf16.msra.mxu0 0
    %96 = vmatprep.subr.bf16.mxu0 0
    %97 = vmatpush1.bf16.msra.mxu0 0
    %98 = vmatprep.subr.bf16.mxu0 0
    %99 = vmatpush1.bf16.msra.mxu0 0
    %100 = vmatprep.subr.bf16.mxu0 0
    %101 = vmatpush1.bf16.msra.mxu0 0
    %102 = vmatprep.subr.bf16.mxu0 0
    %103 = vmatpush1.bf16.msra.mxu0 0
    %104 = vmatprep.subr.bf16.mxu0 0
    %105 = vmatpush1.bf16.msra.mxu0 0
    %106 = vmatprep.subr.bf16.mxu0 0
    %107 = vmatpush1.bf16.msra.mxu0 0
    %108 = vmatprep.subr.bf16.mxu0 0
    %109 = vmatpush1.bf16.msra.mxu0 0
    %110 = vmatprep.subr.bf16.mxu0 0
    %111 = vmatpush1.bf16.msra.mxu0 0
    %112 = vmatprep.mubr.bf16.mxu0 0
    %113 = vmatmul.mubr.bf16.gmra.mrb[0].mxu0 %v75
    %v114 = vpop.f32.mrb[0].mxu0
    %v115 = vadd.f32 %v71, %v114
    %v116 = vpop.f32.mrb[0].mxu0
    %v117 = vpop.f32.mrb[0].mxu0
    %v118 = vadd.f32 %v71, %v117
    %v119 = vpop.f32.mrb[0].mxu0
    %120 = vmatprep.mubr.bf16.mxu0 0
    %121 = vmatmul.mubr.bf16.gmra.mrb[0].mxu0 %v78
    %v122 = vpop.f32.mrb[0].mxu0
    %v123 = vadd.f32 %v71, %v122
    %v124 = vpop.f32.mrb[0].mxu0
    %v125 = vpop.f32.mrb[0].mxu0
    %v126 = vadd.f32 %v71, %v125
    %v127 = vpop.f32.mrb[0].mxu0
    %128 = vdwg.mxu0
    %vm129 = vcmask 64512
    %v130 = vsel %vm129, %v115, -inf
    %131 = vmax.xlane.f32.xlu0 %v130
    %v132 = vpop.xlane.xlu0 %131
    %v133 = vsel %vm129, %v118, -inf
    %134 = vmax.xlane.f32.xlu0 %v133
    %v135 = vpop.xlane.xlu0 %134
    %v136 = vsel %vm129, %v123, -inf
    %137 = vmax.xlane.f32.xlu0 %v136
    %v138 = vpop.xlane.xlu0 %137
    %v139 = vsel %vm129, %v126, -inf
    %140 = vmax.xlane.f32.xlu0 %v139
    %v141 = vpop.xlane.xlu0 %140
    %v142 = vsub.f32 %v115, %v132
    %v143 = vsub.f32 %v118, %v135
    %v144 = vsub.f32 %v123, %v138
    %v145 = vsub.f32 %v126, %v141
    %v146 = vmul.f32 %v142, 1.442695
    %v147 = vpow.pop %v146
    %v148 = vmul.f32 %v143, 1.442695
    %v149 = vpow.pop %v148
    %v150 = vmul.f32 %v144, 1.442695
    %v151 = vpow.pop %v150
    %v152 = vmul.f32 %v145, 1.442695
    %v153 = vpow.pop %v152
    %v154 = vsel %vm129, %v147, 0.0
    %155 = vadd.xlane.f32.xlu0 %v154
    %v156 = vpop.xlane.xlu0 %155
    %v157 = vsel %vm129, %v149, 0.0
    %158 = vadd.xlane.f32.xlu0 %v157
    %v159 = vpop.xlane.xlu0 %158
    %v160 = vsel %vm129, %v151, 0.0
    %161 = vadd.xlane.f32.xlu0 %v160
    %v162 = vpop.xlane.xlu0 %161
    %v163 = vsel %vm129, %v153, 0.0
    %164 = vadd.xlane.f32.xlu0 %v163
    %v165 = vpop.xlane.xlu0 %164
    %v166 = vrcp.pop %v156
    %v167 = vmul.f32 %v147, %v166
    %v168 = vrcp.pop %v159
    %v169 = vmul.f32 %v149, %v168
    %v170 = vrcp.pop %v162
    %v171 = vmul.f32 %v151, %v170
    %v172 = vrcp.pop %v165
    %v173 = vmul.f32 %v153, %v172
    %v174 = vpack.c.bf16 %v169, %v167
    %v175 = vpack.c.bf16 %v173, %v171
    %177 = vrot.lane.b32.xlu0 %v175, 8
    %v178 = vpop.permute.xlu0 %177
    %v181 = vsel %vm129, %v174, %v178
    %v185 = vunpack.c.l.b16 %v32
    %v186 = vunpack.c.l.b16 %v33
    %v187 = vpack.c.b16 %v186, %v185
    %vm188 = vcmask 130048
    %v190 = vsel %vm188, %v187, 0
    %192 = vmatprep.subr.bf16.mxu0 0
    %193 = vmatpush1.bf16.msra.mxu0 %v181
    %194 = vmatprep.subr.bf16.mxu0 0
    %195 = vmatpush1.bf16.msra.mxu0 0
    %196 = vmatprep.subr.bf16.mxu0 0
    %197 = vmatpush1.bf16.msra.mxu0 0
    %198 = vmatprep.subr.bf16.mxu0 0
    %199 = vmatpush1.bf16.msra.mxu0 0
    %200 = vmatprep.subr.bf16.mxu0 0
    %201 = vmatpush1.bf16.msra.mxu0 0
    %202 = vmatprep.subr.bf16.mxu0 0
    %203 = vmatpush1.bf16.msra.mxu0 0
    %204 = vmatprep.subr.bf16.mxu0 0
    %205 = vmatpush1.bf16.msra.mxu0 0
    %206 = vmatprep.subr.bf16.mxu0 0
    %207 = vmatpush1.bf16.msra.mxu0 0
    %208 = vmatprep.subr.bf16.mxu0 0
    %209 = vmatpush1.bf16.msra.mxu0 0
    %210 = vmatprep.subr.bf16.mxu0 0
    %211 = vmatpush1.bf16.msra.mxu0 0
    %212 = vmatprep.subr.bf16.mxu0 0
    %213 = vmatpush1.bf16.msra.mxu0 0
    %214 = vmatprep.subr.bf16.mxu0 0
    %215 = vmatpush1.bf16.msra.mxu0 0
    %216 = vmatprep.subr.bf16.mxu0 0
    %217 = vmatpush1.bf16.msra.mxu0 0
    %218 = vmatprep.subr.bf16.mxu0 0
    %219 = vmatpush1.bf16.msra.mxu0 0
    %220 = vmatprep.subr.bf16.mxu0 0
    %221 = vmatpush1.bf16.msra.mxu0 0
    %222 = vmatprep.subr.bf16.mxu0 0
    %223 = vmatpush1.bf16.msra.mxu0 0
    %224 = vmatprep.mubr.bf16.mxu0 0
    %225 = vmatmul.mubr.bf16.gmra.mrb[0].mxu0 %v190
    %v226 = vpop.f32.mrb[0].mxu0
    %v227 = vadd.f32 0.0, %v226
    %v228 = vpop.f32.mrb[0].mxu0
    %v229 = vpop.f32.mrb[0].mxu0
    %v230 = vadd.f32 0.0, %v229
    %v231 = vpop.f32.mrb[0].mxu0
    %232 = vdwg.mxu0
    %233 = vxpose.xlu0.c.b16.start [1/8] %v174, 128
    %234 = vxpose.xlu0.c.b16.cont [2/8] 0, 128
    %235 = vxpose.xlu0.c.b16.cont [3/8] 0, 128
    %236 = vxpose.xlu0.c.b16.cont [4/8] 0, 128
    %237 = vxpose.xlu0.c.b16.cont [5/8] 0, 128
    %238 = vxpose.xlu0.c.b16.cont [6/8] 0, 128
    %239 = vxpose.xlu0.c.b16.cont [7/8] 0, 128
    %240 = vxpose.xlu0.c.b16.end [8/8] 0, 128
    %v241 = vpop.trf.xlu0
    %v242 = vpop.trf.xlu0
    %v243 = vpop.trf.xlu0
    %v244 = vpop.trf.xlu0
    %v245 = vpop.trf.xlu0
    %v246 = vpop.trf.xlu0
    %v247 = vpop.trf.xlu0
    %v248 = vpop.trf.xlu0
    %v250 = vsel %vm188, %v241, 0
    %252 = vmatprep.subr.bf16.mxu0 0
    %253 = vmatpush1.bf16.msra.mxu0 %v63
    %254 = vmatprep.subr.bf16.mxu0 0
    %255 = vmatpush1.bf16.msra.mxu0 0
    %256 = vmatprep.subr.bf16.mxu0 0
    %257 = vmatpush1.bf16.msra.mxu0 0
    %258 = vmatprep.subr.bf16.mxu0 0
    %259 = vmatpush1.bf16.msra.mxu0 0
    %260 = vmatprep.subr.bf16.mxu0 0
    %261 = vmatpush1.bf16.msra.mxu0 0
    %262 = vmatprep.subr.bf16.mxu0 0
    %263 = vmatpush1.bf16.msra.mxu0 0
    %264 = vmatprep.subr.bf16.mxu0 0
    %265 = vmatpush1.bf16.msra.mxu0 0
    %266 = vmatprep.subr.bf16.mxu0 0
    %267 = vmatpush1.bf16.msra.mxu0 0
    %268 = vmatprep.subr.bf16.mxu0 0
    %269 = vmatpush1.bf16.msra.mxu0 0
    %270 = vmatprep.subr.bf16.mxu0 0
    %271 = vmatpush1.bf16.msra.mxu0 0
    %272 = vmatprep.subr.bf16.mxu0 0
    %273 = vmatpush1.bf16.msra.mxu0 0
    %274 = vmatprep.subr.bf16.mxu0 0
    %275 = vmatpush1.bf16.msra.mxu0 0
    %276 = vmatprep.subr.bf16.mxu0 0
    %277 = vmatpush1.bf16.msra.mxu0 0
    %278 = vmatprep.subr.bf16.mxu0 0
    %279 = vmatpush1.bf16.msra.mxu0 0
    %280 = vmatprep.subr.bf16.mxu0 0
    %281 = vmatpush1.bf16.msra.mxu0 0
    %282 = vmatprep.subr.bf16.mxu0 0
    %283 = vmatpush1.bf16.msra.mxu0 0
    %284 = vmatprep.mubr.bf16.mxu0 0
    %285 = vmatmul.mubr.bf16.gmra.mrb[0].mxu0 %v250
    %v286 = vpop.f32.mrb[0].mxu0
    %v287 = vadd.f32 0.0, %v286
    %v288 = vpop.f32.mrb[0].mxu0
    %v289 = vpop.f32.mrb[0].mxu0
    %v290 = vpop.f32.mrb[0].mxu0
    %291 = vdwg.mxu0
    %vm292 = vcmp.gt.f32.partialorder %v287, 0.0
    %v293 = vmin.f32 %v287, 0.0
    %v294 = vmul.f32 %v293, 1.442695
    %v295 = vpow.pop %v294
    %v296 = vsub.f32 %v295, 1.0
    %v297 = vmul.f32 %v296, 1.6732632
    %v298 = vsel %vm292, %v287, %v297
    %v299 = vmul.f32 %v298, 1.050701
    %v300 = vpack.c.bf16 %v230, %v227
    %301 = vmatprep.subr.bf16.mxu0 0
    %302 = vmatpush1.bf16.msra.mxu0 %v300
    %303 = vmatprep.subr.bf16.mxu0 0
    %304 = vmatpush1.bf16.msra.mxu0 0
    %305 = vmatprep.subr.bf16.mxu0 0
    %306 = vmatpush1.bf16.msra.mxu0 0
    %307 = vmatprep.subr.bf16.mxu0 0
    %308 = vmatpush1.bf16.msra.mxu0 0
    %309 = vmatprep.subr.bf16.mxu0 0
    %310 = vmatpush1.bf16.msra.mxu0 0
    %311 = vmatprep.subr.bf16.mxu0 0
    %312 = vmatpush1.bf16.msra.mxu0 0
    %313 = vmatprep.subr.bf16.mxu0 0
    %314 = vmatpush1.bf16.msra.mxu0 0
    %315 = vmatprep.subr.bf16.mxu0 0
    %316 = vmatpush1.bf16.msra.mxu0 0
    %317 = vmatprep.subr.bf16.mxu0 0
    %318 = vmatpush1.bf16.msra.mxu0 0
    %319 = vmatprep.subr.bf16.mxu0 0
    %320 = vmatpush1.bf16.msra.mxu0 0
    %321 = vmatprep.subr.bf16.mxu0 0
    %322 = vmatpush1.bf16.msra.mxu0 0
    %323 = vmatprep.subr.bf16.mxu0 0
    %324 = vmatpush1.bf16.msra.mxu0 0
    %325 = vmatprep.subr.bf16.mxu0 0
    %326 = vmatpush1.bf16.msra.mxu0 0
    %327 = vmatprep.subr.bf16.mxu0 0
    %328 = vmatpush1.bf16.msra.mxu0 0
    %329 = vmatprep.subr.bf16.mxu0 0
    %330 = vmatpush1.bf16.msra.mxu0 0
    %331 = vmatprep.subr.bf16.mxu0 0
    %332 = vmatpush1.bf16.msra.mxu0 0
    %333 = vmatprep.mubr.bf16.mxu0 0
    %334 = vmatmul.mubr.bf16.gmra.mrb[0].mxu0 %v250
    %v335 = vpop.f32.mrb[0].mxu0
    %v336 = vadd.f32 0.0, %v335
    %v337 = vpop.f32.mrb[0].mxu0
    %v338 = vpop.f32.mrb[0].mxu0
    %v339 = vpop.f32.mrb[0].mxu0
    %340 = vdwg.mxu0
    %342 = vset.pattern.permute.xlu0 0
    %343 = vperm.xlu0 %342, %v26
    %v344 = vpop.permute.xlu0 %343
    %347 = vset.pattern.permute.xlu0 0
    %348 = vperm.xlu0 %347, %v27
    %v349 = vpop.permute.xlu0 %348
    %v351 = vmul.f32 %v167, %v344
    %v352 = vmul.f32 %v169, %v349
    %v353 = vsel %vm129, %v351, 0.0
    %v354 = vsel %vm129, %v352, 0.0
    %v355 = vadd.f32 %v353, %v354
    %v356 = vrot.slane %v355, 4
    %v357 = vadd.f32 %v355, %v356
    %v358 = vrot.slane %v357, 2
    %v359 = vadd.f32 %v357, %v358
    %v360 = vrot.slane %v359, 1
    %v361 = vadd.f32 %v359, %v360
    %v362 = vmul.f32 %v336, %v45
    %v363 = vsel %vm129, %v362, 0.0
    %364 = vadd.xlane.f32.xlu0 %v363
    %v365 = vpop.xlane.xlu0 %364
    %v366 = vrot.slane %v365, 4
    %v367 = vadd.f32 %v365, %v366
    %v368 = vrot.slane %v367, 2
    %v369 = vadd.f32 %v367, %v368
    %v370 = vrot.slane %v369, 1
    %v371 = vadd.f32 %v369, %v370
    %s372 = vtos %v371
    %v373 = vmul.f32 %v361, %v361
    %vm374 = vcmask 57344
    %v375 = vsel %vm374, %v373, 0.0
    %376 = vadd.xlane.f32.xlu0 %v375
    %v377 = vpop.xlane.xlu0 %376
    %v378 = vrot.slane %v377, 4
    %v379 = vadd.f32 %v377, %v378
    %v380 = vrot.slane %v379, 2
    %v381 = vadd.f32 %v379, %v380
    %v382 = vrot.slane %v381, 1
    %v383 = vadd.f32 %v381, %v382
    %s384 = vtos %v383
    %s385 = smul.f32 %s384, %s62
    %s386 = ssub.f32 %s372, %s385
    %s387 = ssub.f32 0.0, %s386
    %s388 = smul.f32 %s387, %s62
    %s389 = sadd.f32 %s388, 0.0
    %390 = vmatprep.subr.bf16.mxu0 0
    %391 = vmatpush1.bf16.msra.mxu0 %v174
    %392 = vmatprep.subr.bf16.mxu0 0
    %393 = vmatpush1.bf16.msra.mxu0 0
    %394 = vmatprep.subr.bf16.mxu0 0
    %395 = vmatpush1.bf16.msra.mxu0 0
    %396 = vmatprep.subr.bf16.mxu0 0
    %397 = vmatpush1.bf16.msra.mxu0 0
    %398 = vmatprep.subr.bf16.mxu0 0
    %399 = vmatpush1.bf16.msra.mxu0 0
    %400 = vmatprep.subr.bf16.mxu0 0
    %401 = vmatpush1.bf16.msra.mxu0 0
    %402 = vmatprep.subr.bf16.mxu0 0
    %403 = vmatpush1.bf16.msra.mxu0 0
    %404 = vmatprep.subr.bf16.mxu0 0
    %405 = vmatpush1.bf16.msra.mxu0 0
    %406 = vmatprep.subr.bf16.mxu0 0
    %407 = vmatpush1.bf16.msra.mxu0 0
    %408 = vmatprep.subr.bf16.mxu0 0
    %409 = vmatpush1.bf16.msra.mxu0 0
    %410 = vmatprep.subr.bf16.mxu0 0
    %411 = vmatpush1.bf16.msra.mxu0 0
    %412 = vmatprep.subr.bf16.mxu0 0
    %413 = vmatpush1.bf16.msra.mxu0 0
    %414 = vmatprep.subr.bf16.mxu0 0
    %415 = vmatpush1.bf16.msra.mxu0 0
    %416 = vmatprep.subr.bf16.mxu0 0
    %417 = vmatpush1.bf16.msra.mxu0 0
    %418 = vmatprep.subr.bf16.mxu0 0
    %419 = vmatpush1.bf16.msra.mxu0 0
    %420 = vmatprep.subr.bf16.mxu0 0
    %421 = vmatpush1.bf16.msra.mxu0 0
    %422 = vmatprep.mubr.bf16.mxu0 0
    %423 = vmatmul.mubr.bf16.gmra.mrb[0].mxu0 %v250
    %v424 = vpop.f32.mrb[0].mxu0
    %v425 = vadd.f32 0.0, %v424
    %v426 = vpop.f32.mrb[0].mxu0
    %v427 = vpop.f32.mrb[0].mxu0
    %v428 = vpop.f32.mrb[0].mxu0
    %429 = vdwg.mxu0
    %v430 = vmul.f32 %v425, %v425
    %v431 = vsel %vm129, %v430, 0.0
    %432 = vadd.xlane.f32.xlu0 %v431
    %v433 = vpop.xlane.xlu0 %432
    %v434 = vrot.slane %v433, 4
    %v435 = vadd.f32 %v433, %v434
    %v436 = vrot.slane %v435, 2
    %v437 = vadd.f32 %v435, %v436
    %v438 = vrot.slane %v437, 1
    %v439 = vadd.f32 %v437, %v438
    %s440 = vtos %v439
    %v441 = vstv %s440
    %v442 = vrsqrt.pop %v441
    %s443 = vtos %v442
    %v444 = vstv %s443
    %v445 = vmul.f32 %v425, %v444
    %v446 = vmul.f32 %v45, 0.35355338
    %v447 = vsub.f32 %v445, %v446
    %v448 = vmul.f32 %v447, %v447
    %v449 = vsel %vm129, %v448, 0.0
    %450 = vadd.xlane.f32.xlu0 %v449
    %v451 = vpop.xlane.xlu0 %450
    %v452 = vrot.slane %v451, 4
    %v453 = vadd.f32 %v451, %v452
    %v454 = vrot.slane %v453, 2
    %v455 = vadd.f32 %v453, %v454
    %v456 = vrot.slane %v455, 1
    %v457 = vadd.f32 %v455, %v456
    %s458 = vtos %v457
    %v459 = vstv %s458
    %v460 = vrsqrt.pop %v459
    %v461 = vmul.f32 %v459, %v460
    %vm462 = vcmp.eq.f32.partialorder %v459, inf
    %v463 = vsel %vm462, %v459, %v461
    %vm464 = vcmp.eq.f32.partialorder %v459, 0.0
    %v465 = vand.u32 %v459, 2147483648
    %v466 = vsel %vm464, %v465, %v463
    %s467 = vtos %v466
    %s468 = sadd.f32 %s467, 0.0
    %v469 = vsel %vm129, %v167, 0.0
    %v470 = vsel %vm129, %v169, 0.0
    %v471 = vadd.f32 %v469, %v470
    %v472 = vrot.slane %v471, 4
    %v473 = vadd.f32 %v471, %v472
    %v474 = vrot.slane %v473, 2
    %v475 = vadd.f32 %v473, %v474
    %v476 = vrot.slane %v475, 1
    %v477 = vadd.f32 %v475, %v476
    %v478 = vmul.f32 %v477, %v477
    %v479 = vsel %vm374, %v478, 0.0
    %480 = vadd.xlane.f32.xlu0 %v479
    %v481 = vpop.xlane.xlu0 %480
    %v482 = vrot.slane %v481, 4
    %v483 = vadd.f32 %v481, %v482
    %v484 = vrot.slane %v483, 2
    %v485 = vadd.f32 %v483, %v484
    %v486 = vrot.slane %v485, 1
    %v487 = vadd.f32 %v485, %v486
    %s488 = vtos %v487
    %v489 = vstv %s488
    %v490 = vrsqrt.pop %v489
    %v491 = vmul.f32 %v489, %v490
    %vm492 = vcmp.eq.f32.partialorder %v489, inf
    %v493 = vsel %vm492, %v489, %v491
    %vm494 = vcmp.eq.f32.partialorder %v489, 0.0
    %v495 = vand.u32 %v489, 2147483648
    %v496 = vsel %vm494, %v495, %v493
    %s497 = vtos %v496
    %s498 = smul.f32 %s497, 0.17677669
    %s499 = ssub.f32 %s498, 1.0
    %s500 = sadd.f32 %s499, 0.0
    %v501 = vmul.f32 %v336, %v46
    %v502 = vsel %vm129, %v501, 0.0
    %503 = vadd.xlane.f32.xlu0 %v502
    %v504 = vpop.xlane.xlu0 %503
    %v505 = vrsqrt.pop %v504
    %v506 = vmul.f32 %v504, %v505
    %vm507 = vcmp.eq.f32.partialorder %v504, inf
    %v508 = vsel %vm507, %v504, %v506
    %vm509 = vcmp.eq.f32.partialorder %v504, 0.0
    %v510 = vand.u32 %v504, 2147483648
    %v511 = vsel %vm509, %v510, %v508
    %v512 = vadd.f32 %v511, 1e-15
    %v514 = vsel %vm129, 1.0, 0
    %v517 = vsel %vm129, %v501, 0
    %519 = vmatprep.subr.mxu0 0.0
    %520 = vmatpush1.xpose.msra.mxu0 %v517
    %521 = vmatprep.subr.mxu0 0.0
    %522 = vmatpush1.xpose.msra.mxu0 0.0
    %523 = vmatprep.subr.mxu0 0.0
    %524 = vmatpush1.xpose.msra.mxu0 0.0
    %525 = vmatprep.subr.mxu0 0.0
    %526 = vmatpush1.xpose.msra.mxu0 0.0
    %527 = vmatprep.subr.mxu0 0.0
    %528 = vmatpush1.xpose.msra.mxu0 0.0
    %529 = vmatprep.subr.mxu0 0.0
    %530 = vmatpush1.xpose.msra.mxu0 0.0
    %531 = vmatprep.subr.mxu0 0.0
    %532 = vmatpush1.xpose.msra.mxu0 0.0
    %533 = vmatprep.subr.mxu0 0.0
    %534 = vmatpush1.xpose.msra.mxu0 0.0
    %535 = vmatprep.subr.mxu0 0.0
    %536 = vmatpush1.xpose.msra.mxu0 0.0
    %537 = vmatprep.subr.mxu0 0.0
    %538 = vmatpush1.xpose.msra.mxu0 0.0
    %539 = vmatprep.subr.mxu0 0.0
    %540 = vmatpush1.xpose.msra.mxu0 0.0
    %541 = vmatprep.subr.mxu0 0.0
    %542 = vmatpush1.xpose.msra.mxu0 0.0
    %543 = vmatprep.subr.mxu0 0.0
    %544 = vmatpush1.xpose.msra.mxu0 0.0
    %545 = vmatprep.subr.mxu0 0.0
    %546 = vmatpush1.xpose.msra.mxu0 0.0
    %547 = vmatprep.subr.mxu0 0.0
    %548 = vmatpush1.xpose.msra.mxu0 0.0
    %549 = vmatprep.subr.mxu0 0.0
    %550 = vmatpush1.xpose.msra.mxu0 0.0
    %551 = vmatprep.subr.mxu0 0.0
    %552 = vmatpush1.xpose.msra.mxu0 0.0
    %553 = vmatprep.subr.mxu0 0.0
    %554 = vmatpush1.xpose.msra.mxu0 0.0
    %555 = vmatprep.subr.mxu0 0.0
    %556 = vmatpush1.xpose.msra.mxu0 0.0
    %557 = vmatprep.subr.mxu0 0.0
    %558 = vmatpush1.xpose.msra.mxu0 0.0
    %559 = vmatprep.subr.mxu0 0.0
    %560 = vmatpush1.xpose.msra.mxu0 0.0
    %561 = vmatprep.subr.mxu0 0.0
    %562 = vmatpush1.xpose.msra.mxu0 0.0
    %563 = vmatprep.subr.mxu0 0.0
    %564 = vmatpush1.xpose.msra.mxu0 0.0
    %565 = vmatprep.subr.mxu0 0.0
    %566 = vmatpush1.xpose.msra.mxu0 0.0
    %567 = vmatprep.subr.mxu0 0.0
    %568 = vmatpush1.xpose.msra.mxu0 0.0
    %569 = vmatprep.subr.mxu0 0.0
    %570 = vmatpush1.xpose.msra.mxu0 0.0
    %571 = vmatprep.subr.mxu0 0.0
    %572 = vmatpush1.xpose.msra.mxu0 0.0
    %573 = vmatprep.subr.mxu0 0.0
    %574 = vmatpush1.xpose.msra.mxu0 0.0
    %575 = vmatprep.subr.mxu0 0.0
    %576 = vmatpush1.xpose.msra.mxu0 0.0
    %577 = vmatprep.subr.mxu0 0.0
    %578 = vmatpush1.xpose.msra.mxu0 0.0
    %579 = vmatprep.subr.mxu0 0.0
    %580 = vmatpush1.xpose.msra.mxu0 0.0
    %581 = vmatprep.subr.mxu0 0.0
    %582 = vmatpush1.xpose.msra.mxu0 0.0
    %583 = vmatprep.mubr.f32.mxu0 0.0
    %584 = vmatmul.mubr.f32.gmra.mrb[0].mxu0 %v514
    %v585 = vpop.f32.mrb[0].mxu0
    %v586 = vadd.f32 0.0, %v585
    %v587 = vpop.f32.mrb[0].mxu0
    %588 = vdwg.mxu0
    %v589 = vrsqrt.pop %v586
    %v590 = vmul.f32 %v586, %v589
    %vm591 = vcmp.eq.f32.partialorder %v586, inf
    %v592 = vsel %vm591, %v586, %v590
    %vm593 = vcmp.eq.f32.partialorder %v586, 0.0
    %v594 = vand.u32 %v586, 2147483648
    %v595 = vsel %vm593, %v594, %v592
    %v596 = vadd.f32 %v595, 1e-15
    %v597 = vrcp.pop %v512
    %v598 = vmul.f32 %v501, %v597
    %v599 = vrcp.pop %v596
    %v600 = vlaneseq
    %v601 = vshrl.u32 %v600, 7
    %v602 = vsub.s32 0, %v601
    %v603 = vrot.slane %v599, %v602
    %v604 = vmul.f32 %v598, %v603
    %v605 = vadd.f32 %v604, 0.0
    %606 = vxpose.xlu0.c.b16.start [1/8] %v175, 128
    %607 = vxpose.xlu0.c.b16.cont [2/8] 0, 128
    %608 = vxpose.xlu0.c.b16.cont [3/8] 0, 128
    %609 = vxpose.xlu0.c.b16.cont [4/8] 0, 128
    %610 = vxpose.xlu0.c.b16.cont [5/8] 0, 128
    %611 = vxpose.xlu0.c.b16.cont [6/8] 0, 128
    %612 = vxpose.xlu0.c.b16.cont [7/8] 0, 128
    %613 = vxpose.xlu0.c.b16.end [8/8] 0, 128
    %v614 = vpop.trf.xlu0
    %v615 = vpop.trf.xlu0
    %v616 = vpop.trf.xlu0
    %v617 = vpop.trf.xlu0
    %v618 = vpop.trf.xlu0
    %v619 = vpop.trf.xlu0
    %v620 = vpop.trf.xlu0
    %v621 = vpop.trf.xlu0
    %v623 = vsel %vm188, %v614, 0
    %625 = vmatprep.subr.bf16.mxu0 0
    %626 = vmatpush1.bf16.msra.mxu0 %v64
    %627 = vmatprep.subr.bf16.mxu0 0
    %628 = vmatpush1.bf16.msra.mxu0 0
    %629 = vmatprep.subr.bf16.mxu0 0
    %630 = vmatpush1.bf16.msra.mxu0 0
    %631 = vmatprep.subr.bf16.mxu0 0
    %632 = vmatpush1.bf16.msra.mxu0 0
    %633 = vmatprep.subr.bf16.mxu0 0
    %634 = vmatpush1.bf16.msra.mxu0 0
    %635 = vmatprep.subr.bf16.mxu0 0
    %636 = vmatpush1.bf16.msra.mxu0 0
    %637 = vmatprep.subr.bf16.mxu0 0
    %638 = vmatpush1.bf16.msra.mxu0 0
    %639 = vmatprep.subr.bf16.mxu0 0
    %640 = vmatpush1.bf16.msra.mxu0 0
    %641 = vmatprep.subr.bf16.mxu0 0
    %642 = vmatpush1.bf16.msra.mxu0 0
    %643 = vmatprep.subr.bf16.mxu0 0
    %644 = vmatpush1.bf16.msra.mxu0 0
    %645 = vmatprep.subr.bf16.mxu0 0
    %646 = vmatpush1.bf16.msra.mxu0 0
    %647 = vmatprep.subr.bf16.mxu0 0
    %648 = vmatpush1.bf16.msra.mxu0 0
    %649 = vmatprep.subr.bf16.mxu0 0
    %650 = vmatpush1.bf16.msra.mxu0 0
    %651 = vmatprep.subr.bf16.mxu0 0
    %652 = vmatpush1.bf16.msra.mxu0 0
    %653 = vmatprep.subr.bf16.mxu0 0
    %654 = vmatpush1.bf16.msra.mxu0 0
    %655 = vmatprep.subr.bf16.mxu0 0
    %656 = vmatpush1.bf16.msra.mxu0 0
    %657 = vmatprep.mubr.bf16.mxu0 0
    %658 = vmatmul.mubr.bf16.gmra.mrb[0].mxu0 %v623
    %v659 = vpop.f32.mrb[0].mxu0
    %v660 = vadd.f32 0.0, %v659
    %v661 = vpop.f32.mrb[0].mxu0
    %v662 = vpop.f32.mrb[0].mxu0
    %v663 = vpop.f32.mrb[0].mxu0
    %664 = vdwg.mxu0
    %vm665 = vcmp.gt.f32.partialorder %v660, 0.0
    %v666 = vmin.f32 %v660, 0.0
    %v667 = vmul.f32 %v666, 1.442695
    %v668 = vpow.pop %v667
    %v669 = vsub.f32 %v668, 1.0
    %v670 = vmul.f32 %v669, 1.6732632
    %v671 = vsel %vm665, %v660, %v670
    %v672 = vmul.f32 %v671, 1.050701
    %674 = vrot.lane.b32.xlu0 %v300, 120
    %v675 = vpop.permute.xlu0 %674
    %677 = vmatprep.subr.bf16.mxu0 0
    %678 = vmatpush1.bf16.msra.mxu0 %v675
    %679 = vmatprep.subr.bf16.mxu0 0
    %680 = vmatpush1.bf16.msra.mxu0 0
    %681 = vmatprep.subr.bf16.mxu0 0
    %682 = vmatpush1.bf16.msra.mxu0 0
    %683 = vmatprep.subr.bf16.mxu0 0
    %684 = vmatpush1.bf16.msra.mxu0 0
    %685 = vmatprep.subr.bf16.mxu0 0
    %686 = vmatpush1.bf16.msra.mxu0 0
    %687 = vmatprep.subr.bf16.mxu0 0
    %688 = vmatpush1.bf16.msra.mxu0 0
    %689 = vmatprep.subr.bf16.mxu0 0
    %690 = vmatpush1.bf16.msra.mxu0 0
    %691 = vmatprep.subr.bf16.mxu0 0
    %692 = vmatpush1.bf16.msra.mxu0 0
    %693 = vmatprep.subr.bf16.mxu0 0
    %694 = vmatpush1.bf16.msra.mxu0 0
    %695 = vmatprep.subr.bf16.mxu0 0
    %696 = vmatpush1.bf16.msra.mxu0 0
    %697 = vmatprep.subr.bf16.mxu0 0
    %698 = vmatpush1.bf16.msra.mxu0 0
    %699 = vmatprep.subr.bf16.mxu0 0
    %700 = vmatpush1.bf16.msra.mxu0 0
    %701 = vmatprep.subr.bf16.mxu0 0
    %702 = vmatpush1.bf16.msra.mxu0 0
    %703 = vmatprep.subr.bf16.mxu0 0
    %704 = vmatpush1.bf16.msra.mxu0 0
    %705 = vmatprep.subr.bf16.mxu0 0
    %706 = vmatpush1.bf16.msra.mxu0 0
    %707 = vmatprep.subr.bf16.mxu0 0
    %708 = vmatpush1.bf16.msra.mxu0 0
    %709 = vmatprep.mubr.bf16.mxu0 0
    %710 = vmatmul.mubr.bf16.gmra.mrb[0].mxu0 %v623
    %v711 = vpop.f32.mrb[0].mxu0
    %v712 = vadd.f32 0.0, %v711
    %v713 = vpop.f32.mrb[0].mxu0
    %v714 = vpop.f32.mrb[0].mxu0
    %v715 = vpop.f32.mrb[0].mxu0
    %716 = vdwg.mxu0
    %v717 = vmul.f32 %v171, %v344
    %v718 = vmul.f32 %v173, %v349
    %v719 = vsel %vm129, %v717, 0.0
    %v720 = vsel %vm129, %v718, 0.0
    %v721 = vadd.f32 %v719, %v720
    %v722 = vrot.slane %v721, 4
    %v723 = vadd.f32 %v721, %v722
    %v724 = vrot.slane %v723, 2
    %v725 = vadd.f32 %v723, %v724
    %v726 = vrot.slane %v725, 1
    %v727 = vadd.f32 %v725, %v726
    %v728 = vmul.f32 %v712, %v45
    %v729 = vsel %vm129, %v728, 0.0
    %730 = vadd.xlane.f32.xlu0 %v729
    %v731 = vpop.xlane.xlu0 %730
    %v732 = vrot.slane %v731, 4
    %v733 = vadd.f32 %v731, %v732
    %v734 = vrot.slane %v733, 2
    %v735 = vadd.f32 %v733, %v734
    %v736 = vrot.slane %v735, 1
    %v737 = vadd.f32 %v735, %v736
    %s738 = vtos %v737
    %v739 = vmul.f32 %v727, %v727
    %v740 = vsel %vm374, %v739, 0.0
    %741 = vadd.xlane.f32.xlu0 %v740
    %v742 = vpop.xlane.xlu0 %741
    %v743 = vrot.slane %v742, 4
    %v744 = vadd.f32 %v742, %v743
    %v745 = vrot.slane %v744, 2
    %v746 = vadd.f32 %v744, %v745
    %v747 = vrot.slane %v746, 1
    %v748 = vadd.f32 %v746, %v747
    %s749 = vtos %v748
    %s750 = smul.f32 %s749, %s62
    %s751 = ssub.f32 %s738, %s750
    %s752 = ssub.f32 0.0, %s751
    %s753 = smul.f32 %s752, %s62
    %s754 = sadd.f32 %s389, %s753
    %755 = vmatprep.subr.bf16.mxu0 0
    %756 = vmatpush1.bf16.msra.mxu0 %v175
    %757 = vmatprep.subr.bf16.mxu0 0
    %758 = vmatpush1.bf16.msra.mxu0 0
    %759 = vmatprep.subr.bf16.mxu0 0
    %760 = vmatpush1.bf16.msra.mxu0 0
    %761 = vmatprep.subr.bf16.mxu0 0
    %762 = vmatpush1.bf16.msra.mxu0 0
    %763 = vmatprep.subr.bf16.mxu0 0
    %764 = vmatpush1.bf16.msra.mxu0 0
    %765 = vmatprep.subr.bf16.mxu0 0
    %766 = vmatpush1.bf16.msra.mxu0 0
    %767 = vmatprep.subr.bf16.mxu0 0
    %768 = vmatpush1.bf16.msra.mxu0 0
    %769 = vmatprep.subr.bf16.mxu0 0
    %770 = vmatpush1.bf16.msra.mxu0 0
    %771 = vmatprep.subr.bf16.mxu0 0
    %772 = vmatpush1.bf16.msra.mxu0 0
    %773 = vmatprep.subr.bf16.mxu0 0
    %774 = vmatpush1.bf16.msra.mxu0 0
    %775 = vmatprep.subr.bf16.mxu0 0
    %776 = vmatpush1.bf16.msra.mxu0 0
    %777 = vmatprep.subr.bf16.mxu0 0
    %778 = vmatpush1.bf16.msra.mxu0 0
    %779 = vmatprep.subr.bf16.mxu0 0
    %780 = vmatpush1.bf16.msra.mxu0 0
    %781 = vmatprep.subr.bf16.mxu0 0
    %782 = vmatpush1.bf16.msra.mxu0 0
    %783 = vmatprep.subr.bf16.mxu0 0
    %784 = vmatpush1.bf16.msra.mxu0 0
    %785 = vmatprep.subr.bf16.mxu0 0
    %786 = vmatpush1.bf16.msra.mxu0 0
    %787 = vmatprep.mubr.bf16.mxu0 0
    %788 = vmatmul.mubr.bf16.gmra.mrb[0].mxu0 %v623
    %v789 = vpop.f32.mrb[0].mxu0
    %v790 = vadd.f32 0.0, %v789
    %v791 = vpop.f32.mrb[0].mxu0
    %v792 = vpop.f32.mrb[0].mxu0
    %v793 = vpop.f32.mrb[0].mxu0
    %794 = vdwg.mxu0
    %v795 = vmul.f32 %v790, %v790
    %v796 = vsel %vm129, %v795, 0.0
    %797 = vadd.xlane.f32.xlu0 %v796
    %v798 = vpop.xlane.xlu0 %797
    %v799 = vrot.slane %v798, 4
    %v800 = vadd.f32 %v798, %v799
    %v801 = vrot.slane %v800, 2
    %v802 = vadd.f32 %v800, %v801
    %v803 = vrot.slane %v802, 1
    %v804 = vadd.f32 %v802, %v803
    %s805 = vtos %v804
    %v806 = vstv %s805
    %v807 = vrsqrt.pop %v806
    %s808 = vtos %v807
    %v809 = vstv %s808
    %v810 = vmul.f32 %v790, %v809
    %v811 = vsub.f32 %v810, %v446
    %v812 = vmul.f32 %v811, %v811
    %v813 = vsel %vm129, %v812, 0.0
    %814 = vadd.xlane.f32.xlu0 %v813
    %v815 = vpop.xlane.xlu0 %814
    %v816 = vrot.slane %v815, 4
    %v817 = vadd.f32 %v815, %v816
    %v818 = vrot.slane %v817, 2
    %v819 = vadd.f32 %v817, %v818
    %v820 = vrot.slane %v819, 1
    %v821 = vadd.f32 %v819, %v820
    %s822 = vtos %v821
    %v823 = vstv %s822
    %v824 = vrsqrt.pop %v823
    %v825 = vmul.f32 %v823, %v824
    %vm826 = vcmp.eq.f32.partialorder %v823, inf
    %v827 = vsel %vm826, %v823, %v825
    %vm828 = vcmp.eq.f32.partialorder %v823, 0.0
    %v829 = vand.u32 %v823, 2147483648
    %v830 = vsel %vm828, %v829, %v827
    %s831 = vtos %v830
    %s832 = sadd.f32 %s468, %s831
    %v833 = vsel %vm129, %v171, 0.0
    %v834 = vsel %vm129, %v173, 0.0
    %v835 = vadd.f32 %v833, %v834
    %v836 = vrot.slane %v835, 4
    %v837 = vadd.f32 %v835, %v836
    %v838 = vrot.slane %v837, 2
    %v839 = vadd.f32 %v837, %v838
    %v840 = vrot.slane %v839, 1
    %v841 = vadd.f32 %v839, %v840
    %v842 = vmul.f32 %v841, %v841
    %v843 = vsel %vm374, %v842, 0.0
    %844 = vadd.xlane.f32.xlu0 %v843
    %v845 = vpop.xlane.xlu0 %844
    %v846 = vrot.slane %v845, 4
    %v847 = vadd.f32 %v845, %v846
    %v848 = vrot.slane %v847, 2
    %v849 = vadd.f32 %v847, %v848
    %v850 = vrot.slane %v849, 1
    %v851 = vadd.f32 %v849, %v850
    %s852 = vtos %v851
    %v853 = vstv %s852
    %v854 = vrsqrt.pop %v853
    %v855 = vmul.f32 %v853, %v854
    %vm856 = vcmp.eq.f32.partialorder %v853, inf
    %v857 = vsel %vm856, %v853, %v855
    %vm858 = vcmp.eq.f32.partialorder %v853, 0.0
    %v859 = vand.u32 %v853, 2147483648
    %v860 = vsel %vm858, %v859, %v857
    %s861 = vtos %v860
    %s862 = smul.f32 %s861, 0.17677669
    %s863 = ssub.f32 %s862, 1.0
    %s864 = sadd.f32 %s500, %s863
    %v865 = vmul.f32 %v712, %v46
    %v866 = vsel %vm129, %v865, 0.0
    %867 = vadd.xlane.f32.xlu0 %v866
    %v868 = vpop.xlane.xlu0 %867
    %v869 = vrsqrt.pop %v868
    %v870 = vmul.f32 %v868, %v869
    %vm871 = vcmp.eq.f32.partialorder %v868, inf
    %v872 = vsel %vm871, %v868, %v870
    %vm873 = vcmp.eq.f32.partialorder %v868, 0.0
    %v874 = vand.u32 %v868, 2147483648
    %v875 = vsel %vm873, %v874, %v872
    %v876 = vadd.f32 %v875, 1e-15
    %v878 = vsel %vm129, %v865, 0
    %880 = vmatprep.subr.mxu0 0.0
    %881 = vmatpush1.xpose.msra.mxu0 %v878
    %882 = vmatprep.subr.mxu0 0.0
    %883 = vmatpush1.xpose.msra.mxu0 0.0
    %884 = vmatprep.subr.mxu0 0.0
    %885 = vmatpush1.xpose.msra.mxu0 0.0
    %886 = vmatprep.subr.mxu0 0.0
    %887 = vmatpush1.xpose.msra.mxu0 0.0
    %888 = vmatprep.subr.mxu0 0.0
    %889 = vmatpush1.xpose.msra.mxu0 0.0
    %890 = vmatprep.subr.mxu0 0.0
    %891 = vmatpush1.xpose.msra.mxu0 0.0
    %892 = vmatprep.subr.mxu0 0.0
    %893 = vmatpush1.xpose.msra.mxu0 0.0
    %894 = vmatprep.subr.mxu0 0.0
    %895 = vmatpush1.xpose.msra.mxu0 0.0
    %896 = vmatprep.subr.mxu0 0.0
    %897 = vmatpush1.xpose.msra.mxu0 0.0
    %898 = vmatprep.subr.mxu0 0.0
    %899 = vmatpush1.xpose.msra.mxu0 0.0
    %900 = vmatprep.subr.mxu0 0.0
    %901 = vmatpush1.xpose.msra.mxu0 0.0
    %902 = vmatprep.subr.mxu0 0.0
    %903 = vmatpush1.xpose.msra.mxu0 0.0
    %904 = vmatprep.subr.mxu0 0.0
    %905 = vmatpush1.xpose.msra.mxu0 0.0
    %906 = vmatprep.subr.mxu0 0.0
    %907 = vmatpush1.xpose.msra.mxu0 0.0
    %908 = vmatprep.subr.mxu0 0.0
    %909 = vmatpush1.xpose.msra.mxu0 0.0
    %910 = vmatprep.subr.mxu0 0.0
    %911 = vmatpush1.xpose.msra.mxu0 0.0
    %912 = vmatprep.subr.mxu0 0.0
    %913 = vmatpush1.xpose.msra.mxu0 0.0
    %914 = vmatprep.subr.mxu0 0.0
    %915 = vmatpush1.xpose.msra.mxu0 0.0
    %916 = vmatprep.subr.mxu0 0.0
    %917 = vmatpush1.xpose.msra.mxu0 0.0
    %918 = vmatprep.subr.mxu0 0.0
    %919 = vmatpush1.xpose.msra.mxu0 0.0
    %920 = vmatprep.subr.mxu0 0.0
    %921 = vmatpush1.xpose.msra.mxu0 0.0
    %922 = vmatprep.subr.mxu0 0.0
    %923 = vmatpush1.xpose.msra.mxu0 0.0
    %924 = vmatprep.subr.mxu0 0.0
    %925 = vmatpush1.xpose.msra.mxu0 0.0
    %926 = vmatprep.subr.mxu0 0.0
    %927 = vmatpush1.xpose.msra.mxu0 0.0
    %928 = vmatprep.subr.mxu0 0.0
    %929 = vmatpush1.xpose.msra.mxu0 0.0
    %930 = vmatprep.subr.mxu0 0.0
    %931 = vmatpush1.xpose.msra.mxu0 0.0
    %932 = vmatprep.subr.mxu0 0.0
    %933 = vmatpush1.xpose.msra.mxu0 0.0
    %934 = vmatprep.subr.mxu0 0.0
    %935 = vmatpush1.xpose.msra.mxu0 0.0
    %936 = vmatprep.subr.mxu0 0.0
    %937 = vmatpush1.xpose.msra.mxu0 0.0
    %938 = vmatprep.subr.mxu0 0.0
    %939 = vmatpush1.xpose.msra.mxu0 0.0
    %940 = vmatprep.subr.mxu0 0.0
    %941 = vmatpush1.xpose.msra.mxu0 0.0
    %942 = vmatprep.subr.mxu0 0.0
    %943 = vmatpush1.xpose.msra.mxu0 0.0
    %944 = vmatprep.mubr.f32.mxu0 0.0
    %945 = vmatmul.mubr.f32.gmra.mrb[0].mxu0 %v514
    %v946 = vpop.f32.mrb[0].mxu0
    %v947 = vadd.f32 0.0, %v946
    %v948 = vpop.f32.mrb[0].mxu0
    %949 = vdwg.mxu0
    %v950 = vrsqrt.pop %v947
    %v951 = vmul.f32 %v947, %v950
    %vm952 = vcmp.eq.f32.partialorder %v947, inf
    %v953 = vsel %vm952, %v947, %v951
    %vm954 = vcmp.eq.f32.partialorder %v947, 0.0
    %v955 = vand.u32 %v947, 2147483648
    %v956 = vsel %vm954, %v955, %v953
    %v957 = vadd.f32 %v956, 1e-15
    %v958 = vrcp.pop %v876
    %v959 = vmul.f32 %v865, %v958
    %v960 = vrcp.pop %v957
    %v961 = vlaneseq
    %v962 = vshrl.u32 %v961, 7
    %v963 = vsub.s32 0, %v962
    %v964 = vrot.slane %v960, %v963
    %v965 = vmul.f32 %v959, %v964
    %v966 = vadd.f32 %v605, %v965
    %968 = vrot.lane.b32.xlu0 %v672, 32
    %v969 = vpop.permute.xlu0 %968
    %v971 = vsel %vm73, %v299, %v969
    %vm972 = vcmask 523264
    %v973 = vsel %vm972, %v971, 0.0
    %974 = vst [vmem:[#allocation2] sm:$0xff] %v973
    %v975 = vmul.f32 %v966, 0.5
    %v976 = vsel %vm129, %v975, 0.0
    %977 = vst [vmem:[#allocation4] sm:$0xff] %v976
    %vm978 = vcmp.eq.s32.totalorder %v42, 0
    %s979 = smul.f32 %s754, 0.5
    %vm980 = vcmp.eq.s32.totalorder %v42, 1
    %s981 = smul.f32 %s832, 0.5
    %vm982 = vcmp.eq.s32.totalorder %v42, 2
    %s983 = smul.f32 %s864, 0.5
    %v984 = vstv %s983
    %v985 = vsel %vm982, %v984, 0.0
    %v986 = vstv %s981
    %v987 = vsel %vm980, %v986, %v985
    %v988 = vstv %s979
    %v989 = vsel %vm978, %v988, %v987
    %990 = vst [vmem:[#allocation6] sm:$0x1] %v989
    // Predicated region
    $region22: #{tpu_custom_call.1} parent=1 // pred_check
      _
    $region23: #{tpu_custom_call.1} parent=1 // pred_check_branch
      %992 = sbr.rel (0) target = $region25
    $region24: #{tpu_custom_call.1} parent=1 // pred_region
      %s994 = ssub.s32 128, 128
      %995 = vsyncadd [#allocation3], %s994
      %s997 = sshll.u32 [#allocation2], 4
      %s998 = int_to_ptr.vmem [resolvable:$true] %s997
      %1000 = dma.vmem_to_hbm [thread:$0]  %s998, 128, %s5, [#allocation3]
    $region25: #{tpu_custom_call.1} parent=1 // pred_fallthru
      _
    // Predicated region
    $region26: #{tpu_custom_call.1} parent=1 // pred_check
      _
    $region27: #{tpu_custom_call.1} parent=1 // pred_check_branch
      %1002 = sbr.rel (0) target = $region29
    $region28: #{tpu_custom_call.1} parent=1 // pred_region
      %s1004 = ssub.s32 128, 128
      %1005 = vsyncadd [#allocation5], %s1004
      %s1007 = sshll.u32 [#allocation4], 4
      %s1008 = int_to_ptr.vmem [resolvable:$true] %s1007
      %1010 = dma.vmem_to_hbm [thread:$0]  %s1008, 128, %s6, [#allocation5]
    $region29: #{tpu_custom_call.1} parent=1 // pred_fallthru
      _
    // Predicated region
    $region30: #{tpu_custom_call.1} parent=1 // pred_check
      _
    $region31: #{tpu_custom_call.1} parent=1 // pred_check_branch
      %1012 = sbr.rel (0) target = $region33
    $region32: #{tpu_custom_call.1} parent=1 // pred_region
      %s1014 = ssub.s32 16, 16
      %1015 = vsyncadd [#allocation5], %s1014
      %s1017 = sshll.u32 [#allocation6], 4
      %s1018 = int_to_ptr.vmem [resolvable:$true] %s1017
      %1020 = dma.vmem_to_hbm [thread:$0]  %s1018, 16, %s7, [#allocation5]
    $region33: #{tpu_custom_call.1} parent=1 // pred_fallthru
      _
    // Predicated region
    $region34: #{tpu_custom_call.1} parent=1 // pred_check
      _
    $region35: #{tpu_custom_call.1} parent=1 // pred_check_branch
      %1022 = sbr.rel (0) target = $region37
    $region36: #{tpu_custom_call.1} parent=1 // pred_region
      %1023 = dma.done [#allocation3], 128
    $region37: #{tpu_custom_call.1} parent=1 // pred_fallthru
      _
    // Predicated region
    $region38: #{tpu_custom_call.1} parent=1 // pred_check
      _
    $region39: #{tpu_custom_call.1} parent=1 // pred_check_branch
      %1025 = sbr.rel (0) target = $region41
    $region40: #{tpu_custom_call.1} parent=1 // pred_region
      %1026 = dma.done [#allocation5], 128
    $region41: #{tpu_custom_call.1} parent=1 // pred_fallthru
      _
    // Predicated region
    $region42: #{tpu_custom_call.1} parent=1 // pred_check
      _
    $region43: #{tpu_custom_call.1} parent=1 // pred_check_branch
      %1028 = sbr.rel (0) target = $region45
    $region44: #{tpu_custom_call.1} parent=1 // pred_region
      %1029 = dma.done [#allocation5], 16
    $region45: #{tpu_custom_call.1} parent=1 // pred_fallthru
      _
    %1030 = vsyncpa [#allocation3], 1
    %1031 = vsyncpa [#allocation5], 1

</llo_original>
